<compile_context>
chip_gen: v6e
topology: v6e:2x2x1
jax: 0.10.0
libtpu: 0.0.40
codegen_flags: <defaults>
</compile_context>

<pallas_src>
import jax
import jax.numpy as jnp
from jax.experimental import pallas as pl
from jax.experimental.pallas import tpu as pltpu

# Module hyperparameters (the torch forward hardcodes 512-wide window slices,
# i.e. embed_size == 512).
EMBED = 512
HIDDEN = 32


def _lstm_decoder_kernel(x_ref, wih_ref, whh_ref, b_ref, wfc_ref, bfc_ref,
                         out_ref, h_ref, c_ref, fc_ref):
    t_id = pl.program_id(1)            # time-chunk index (serial axis)
    bsz, tc = fc_ref.shape             # (batch tile, fused timesteps)
    hidden = whh_ref.shape[0]          # H
    embed = wih_ref.shape[0]           # E

    # New batch block starts a fresh recurrence.
    @pl.when(t_id == 0)
    def _():
        h_ref[...] = jnp.zeros_like(h_ref)
        c_ref[...] = jnp.zeros_like(c_ref)

    mm_dtype = wih_ref.dtype           # bf16 (fast path) or f32 (exact path)
    wih = wih_ref[...]                 # (E, 4H)  mm_dtype, g-cols pre-scaled x2
    whh = whh_ref[...]                 # (H, 4H)  f32 (state path stays f32)
    # Hoisted broadcasts (JAX does not CSE broadcast_in_dim inside the loop).
    bias_b = jnp.broadcast_to(b_ref[...], (bsz, 4 * hidden))   # (Bt, 4H) f32
    wfc_b = jnp.broadcast_to(wfc_ref[...], (bsz, hidden))      # (Bt, H)  f32
    bfc = bfc_ref[...]                                         # (1, 1)   f32

    # ---- Hoisted input projections: no h dependence, back-to-back MXU dots.
    xw = []
    for j in range(tc):                # static unroll
        x_j = x_ref[:, j * embed:(j + 1) * embed].astype(mm_dtype)   # (Bt, E)
        xw.append(jnp.dot(x_j, wih, preferred_element_type=jnp.float32)
                  + bias_b)                                          # (Bt, 4H)

    # ---- Serial recurrence over the fused timesteps (f32 state).
    h = h_ref[...]                     # (Bt, H)
    c = c_ref[...]                     # (Bt, H)
    for j in range(tc):                # static unroll
        gates = xw[j] + jnp.dot(h, whh, preferred_element_type=jnp.float32)
        sg = jax.nn.sigmoid(gates)     # single EUP pass on the full (Bt, 4H) tile
        i_g = sg[:, 0 * hidden:1 * hidden]
        f_g = sg[:, 1 * hidden:2 * hidden]
        g_g = 2.0 * sg[:, 2 * hidden:3 * hidden] - 1.0   # tanh(g) = 2*sigmoid(2g)-1
        o_g = sg[:, 3 * hidden:4 * hidden]

        c = f_g * c + i_g * g_g
        h = o_g * jnp.tanh(c)

        # fc_out pre-activation off the MXU: VPU multiply + XLU lane-reduce.
        fc_ref[:, j:j + 1] = jnp.sum(h * wfc_b, axis=-1, keepdims=True)

    h_ref[...] = h
    c_ref[...] = c
    # One sigmoid for the whole chunk; full-block store (no concat/transpose).
    out_ref[0, :, :] = jax.nn.sigmoid(fc_ref[...] + bfc).astype(out_ref.dtype)


def _round_up(x, m):
    return ((x + m - 1) // m) * m


def _pick_time_chunk(T):
    """Timesteps fused per grid step. Never falls back to Tc == T."""
    if T % 8 == 0:
        return 8
    for cand in range(min(8, T), 0, -1):
        if T % cand == 0:
            return cand
    return 1


def _pick_batch_tile(B, batch_tile=None):
    if batch_tile is not None:
        return batch_tile
    # Multiple of 8 sublanes; 256 keeps the double-buffered x window small
    # even at B=500 and lets v7x shard batch blocks across its 2 TensorCores.
    return min(256, _round_up(B, 8))


def prepare_params(torch_params, use_bf16_matmul=True):
    """One-time conversion of torch-layout params to kernel layout.
    torch layout: w_ih (4H,E), w_hh (4H,H), b_ih (4H,), b_hh (4H,),
                  w_fc (1,H), b_fc (1,).  Gate order (i, f, g, o)."""
    w_ih, w_hh, b_ih, b_hh, w_fc, b_fc = torch_params
    wih = jnp.asarray(w_ih, jnp.float32).T                     # (E, 4H)
    whh = jnp.asarray(w_hh, jnp.float32).T                     # (H, 4H)
    bias = (jnp.asarray(b_ih, jnp.float32)
            + jnp.asarray(b_hh, jnp.float32)).reshape(1, -1)   # (1, 4H)

    # Pre-scale the g-gate columns by 2 so the kernel recovers tanh(g) from
    # the single sigmoid pass: tanh(g) = 2*sigmoid(2g) - 1. Scaling by 2 is
    # exact in fp, so the f32 path stays (numerically) equivalent.
    g_scale = jnp.ones((1, 4 * HIDDEN), jnp.float32)
    g_scale = g_scale.at[:, 2 * HIDDEN:3 * HIDDEN].set(2.0)
    wih = wih * g_scale
    whh = whh * g_scale
    bias = bias * g_scale

    mm_dtype = jnp.bfloat16 if use_bf16_matmul else jnp.float32
    wih = wih.astype(mm_dtype)          # only the big K=512 dot goes bf16
    # whh stays f32: hh dot is tiny, and this keeps the recurrent state path
    # free of per-step bf16 rounding.
    wfc = jnp.asarray(w_fc, jnp.float32).reshape(1, HIDDEN)    # (1, H)
    bfc = jnp.asarray(b_fc, jnp.float32).reshape(1, 1)         # (1, 1)
    return wih, whh, bias, wfc, bfc


def rnn_decoder_forward(inp_emb, kernel_params, batch_tile=None):
    """inp_emb: (B, 1, T*EMBED) — torch NCW layout, any float dtype.
    No dtype cast here: a bf16 input stays bf16 all the way to the MXU."""
    wih, whh, bias, wfc, bfc = kernel_params
    B = inp_emb.shape[0]
    T = inp_emb.shape[2] // EMBED

    # Free contiguous reshape (squeeze of the channel dim), no transpose.
    x2d = jnp.reshape(inp_emb, (B, T * EMBED))

    tc = _pick_time_chunk(T)
    bt = _pick_batch_tile(B, batch_tile)
    nt = T // tc
    grid = (pl.cdiv(B, bt), nt)

    out = pl.pallas_call(
        _lstm_decoder_kernel,
        out_shape=jax.ShapeDtypeStruct((nt, B, tc), jnp.float32),
        grid_spec=pltpu.PrefetchScalarGridSpec(
            num_scalar_prefetch=0,
            grid=grid,
            in_specs=[
                pl.BlockSpec((bt, tc * EMBED), lambda b, t: (b, t)),     # x window
                pl.BlockSpec((EMBED, 4 * HIDDEN), lambda b, t: (0, 0)),  # wih
                pl.BlockSpec((HIDDEN, 4 * HIDDEN), lambda b, t: (0, 0)), # whh (f32)
                pl.BlockSpec((1, 4 * HIDDEN), lambda b, t: (0, 0)),      # bias
                pl.BlockSpec((1, HIDDEN), lambda b, t: (0, 0)),          # wfc row
                pl.BlockSpec((1, 1), lambda b, t: (0, 0)),               # bfc
            ],
            out_specs=pl.BlockSpec((1, bt, tc), lambda b, t: (t, b, 0)),
            scratch_shapes=[
                pltpu.VMEM((bt, HIDDEN), jnp.float32),   # hidden state carry
                pltpu.VMEM((bt, HIDDEN), jnp.float32),   # cell state carry
                pltpu.VMEM((bt, tc), jnp.float32),       # fc pre-activations
            ],
        ),
        compiler_params=pltpu.CompilerParams(
            # batch blocks are independent (megacore on v7x); time is the
            # serial recurrence axis.
            dimension_semantics=("parallel", "arbitrary"),
            vmem_limit_bytes=32 * 1024 * 1024),
    )(x2d, wih, whh, bias, wfc, bfc)

    # Tiny relayout of the (nt, B, tc) output (T*B*4 bytes, ~1/256 of x).
    # torch does outs.reshape(500, 1, -1); 500 == batch there — use actual B.
    return jnp.transpose(out, (1, 0, 2)).reshape(B, 1, T)


def _reference_forward(inp_emb, torch_params):
    """Pure-JAX f32 reference of the torch forward (for validation)."""
    w_ih, w_hh, b_ih, b_hh, w_fc, b_fc = torch_params
    B = inp_emb.shape[0]
    T = inp_emb.shape[2] // EMBED
    x = inp_emb.astype(jnp.float32)
    wih_t, whh_t = w_ih.T, w_hh.T
    bias = (b_ih + b_hh).reshape(1, -1)
    h = jnp.zeros((B, HIDDEN), jnp.float32)
    c = jnp.zeros((B, HIDDEN), jnp.float32)
    cols = []
    for idx in range(T):
        xs = x[:, 0, idx * EMBED:(idx + 1) * EMBED]
        gates = xs @ wih_t + h @ whh_t + bias
        i = jax.nn.sigmoid(gates[:, 0 * HIDDEN:1 * HIDDEN])
        f = jax.nn.sigmoid(gates[:, 1 * HIDDEN:2 * HIDDEN])
        g = jnp.tanh(gates[:, 2 * HIDDEN:3 * HIDDEN])
        o = jax.nn.sigmoid(gates[:, 3 * HIDDEN:4 * HIDDEN])
        c = f * c + i * g
        h = o * jnp.tanh(c)
        cols.append(jax.nn.sigmoid(h @ w_fc.T + b_fc.reshape(1, 1)).reshape(-1))
    outs = jnp.stack(cols, axis=1)
    return outs.reshape(B, 1, -1)


def _init_params(key):
    """Deterministic init matching the torch module's parameter shapes."""
    k = jax.random.split(key, 6)
    bound = 1.0 / jnp.sqrt(jnp.float32(HIDDEN))
    w_ih = jax.random.uniform(k[0], (4 * HIDDEN, EMBED), jnp.float32, -bound, bound)
    w_hh = jax.random.uniform(k[1], (4 * HIDDEN, HIDDEN), jnp.float32, -bound, bound)
    b_ih = jax.random.uniform(k[2], (4 * HIDDEN,), jnp.float32, -bound, bound)
    b_hh = jax.random.uniform(k[3], (4 * HIDDEN,), jnp.float32, -bound, bound)
    w_fc = jax.random.uniform(k[4], (1, HIDDEN), jnp.float32, -bound, bound)
    b_fc = jax.random.uniform(k[5], (1,), jnp.float32, -bound, bound)
    return w_ih, w_hh, b_ih, b_hh, w_fc, b_fc


if __name__ == "__main__":
    key = jax.random.PRNGKey(0)
    k_params, k_x1, k_x2 = jax.random.split(key, 3)
    torch_params = _init_params(k_params)

    # ---- Config 1: small single-block case, exact f32 path -----------------
    B, T = 8, 8
    x_f32 = jax.random.normal(k_x1, (B, 1, T * EMBED), jnp.float32)
    ref = _reference_forward(x_f32, torch_params)

    kp_f32 = prepare_params(torch_params, use_bf16_matmul=False)
    out_f32 = jax.block_until_ready(rnn_decoder_forward(x_f32, kp_f32))
    assert out_f32.shape == (B, 1, T), out_f32.shape
    assert jnp.allclose(out_f32, ref, atol=1e-4, rtol=1e-4), \
        float(jnp.max(jnp.abs(out_f32 - ref)))

    # ---- Config 1b: bf16 x stream end-to-end (no wrapper cast) -------------
    x_bf16 = x_f32.astype(jnp.bfloat16)          # stands in for an upstream bf16 producer
    kp_bf16 = prepare_params(torch_params, use_bf16_matmul=True)
    ref_b = _reference_forward(x_bf16.astype(jnp.float32), torch_params)
    out_b = jax.block_until_ready(rnn_decoder_forward(x_bf16, kp_bf16))
    assert out_b.shape == (B, 1, T), out_b.shape
    assert jnp.allclose(out_b, ref_b, atol=3e-2, rtol=3e-2), \
        float(jnp.max(jnp.abs(out_b - ref_b)))

    # ---- Config 2: multi time-chunk + parallel batch grid axis -------------
    B2, T2 = 16, 16
    x2 = jax.random.normal(k_x2, (B2, 1, T2 * EMBED), jnp.float32).astype(jnp.bfloat16)
    ref2 = _reference_forward(x2.astype(jnp.float32), torch_params)
    out2 = jax.block_until_ready(
        rnn_decoder_forward(x2, kp_bf16, batch_tile=8))   # grid = (2, 2)
    assert out2.shape == (B2, 1, T2), out2.shape
    assert jnp.allclose(out2, ref2, atol=3e-2, rtol=3e-2), \
        float(jnp.max(jnp.abs(out2 - ref2)))

    print("KERNEL_OK")
</pallas_src>

<mosaic_0001>
module attributes {stable_mosaic.version = 11 : i64} {
  func.func @_lstm_decoder_kernel(%arg0: i32, %arg1: i32, %arg2: memref<8x4096xf32, #tpu.memory_space<vmem>>, %arg3: memref<512x128xf32, #tpu.memory_space<vmem>>, %arg4: memref<32x128xf32, #tpu.memory_space<vmem>>, %arg5: memref<1x128xf32, #tpu.memory_space<vmem>>, %arg6: memref<1x32xf32, #tpu.memory_space<vmem>>, %arg7: memref<1x1xf32, #tpu.memory_space<vmem>>, %arg8: memref<1x8x8xf32, #tpu.memory_space<vmem>>, %arg9: memref<8x32xf32, #tpu.memory_space<vmem>>, %arg10: memref<8x32xf32, #tpu.memory_space<vmem>>, %arg11: memref<8x8xf32, #tpu.memory_space<vmem>>) attributes {dimension_semantics = [#tpu.dimension_semantics<parallel>, #tpu.dimension_semantics<arbitrary>], iteration_bounds = array<i64: 1, 1>, scalar_prefetch = 0 : i64, scratch_operands = 3 : i64, tpu.core_type = #tpu.core_type<tc>, window_params = [{transform_indices = @transform_0, window_bounds = array<i64: 8, 4096>}, {pipeline_mode = #tpu.pipeline_mode<synchronous>, transform_indices = @transform_1, window_bounds = array<i64: 512, 128>}, {pipeline_mode = #tpu.pipeline_mode<synchronous>, transform_indices = @transform_2, window_bounds = array<i64: 32, 128>}, {pipeline_mode = #tpu.pipeline_mode<synchronous>, transform_indices = @transform_3, window_bounds = array<i64: 1, 128>}, {pipeline_mode = #tpu.pipeline_mode<synchronous>, transform_indices = @transform_4, window_bounds = array<i64: 1, 32>}, {pipeline_mode = #tpu.pipeline_mode<synchronous>, transform_indices = @transform_5, window_bounds = array<i64: 1, 1>}, {transform_indices = @transform_6, window_bounds = array<i64: 1, 8, 8>}]} {
    %c0_i32 = arith.constant 0 : i32
    %0 = arith.cmpi eq, %arg1, %c0_i32 : i32
    %1 = arith.extui %0 : i1 to i32
    %c0_i32_0 = arith.constant 0 : i32
    %2 = arith.cmpi ne, %1, %c0_i32_0 : i32
    scf.if %2 {
      %cst_89 = arith.constant 0.000000e+00 : f32
      %243 = vector.broadcast %cst_89 : f32 to vector<8x32xf32>
      %c0_90 = arith.constant 0 : index
      %c0_91 = arith.constant 0 : index
      %244 = vector.load %arg9[%c0_90, %c0_91] : memref<8x32xf32, #tpu.memory_space<vmem>>, vector<8x32xf32>
      tpu.vector_store %arg9[%c0_90, %c0_91], %243 {strides = array<i32>} : memref<8x32xf32, #tpu.memory_space<vmem>>, vector<8x32xf32>,
      %cst_92 = arith.constant 0.000000e+00 : f32
      %245 = vector.broadcast %cst_92 : f32 to vector<8x32xf32>
      %c0_93 = arith.constant 0 : index
      %c0_94 = arith.constant 0 : index
      %246 = vector.load %arg10[%c0_93, %c0_94] : memref<8x32xf32, #tpu.memory_space<vmem>>, vector<8x32xf32>
      tpu.vector_store %arg10[%c0_93, %c0_94], %245 {strides = array<i32>} : memref<8x32xf32, #tpu.memory_space<vmem>>, vector<8x32xf32>,
    } else {
    }
    %c0 = arith.constant 0 : index
    %c0_1 = arith.constant 0 : index
    %3 = vector.load %arg3[%c0, %c0_1] : memref<512x128xf32, #tpu.memory_space<vmem>>, vector<512x128xf32>
    %c0_2 = arith.constant 0 : index
    %c0_3 = arith.constant 0 : index
    %4 = vector.load %arg4[%c0_2, %c0_3] : memref<32x128xf32, #tpu.memory_space<vmem>>, vector<32x128xf32>
    %c0_4 = arith.constant 0 : index
    %c0_5 = arith.constant 0 : index
    %5 = vector.load %arg5[%c0_4, %c0_5] : memref<1x128xf32, #tpu.memory_space<vmem>>, vector<1x128xf32>
    %6 = vector.shape_cast %5 : vector<1x128xf32> to vector<1x128xf32>
    %7 = vector.broadcast %6 : vector<1x128xf32> to vector<8x128xf32>
    %c0_6 = arith.constant 0 : index
    %c0_7 = arith.constant 0 : index
    %8 = vector.load %arg6[%c0_6, %c0_7] : memref<1x32xf32, #tpu.memory_space<vmem>>, vector<1x32xf32>
    %9 = vector.shape_cast %8 : vector<1x32xf32> to vector<1x32xf32>
    %10 = vector.broadcast %9 : vector<1x32xf32> to vector<8x32xf32>
    %c0_8 = arith.constant 0 : index
    %c0_9 = arith.constant 0 : index
    %11 = vector.load %arg7[%c0_8, %c0_9] : memref<1x1xf32, #tpu.memory_space<vmem>>, vector<1x1xf32>
    %c0_10 = arith.constant 0 : index
    %c0_11 = arith.constant 0 : index
    %12 = vector.load %arg2[%c0_10, %c0_11] : memref<8x4096xf32, #tpu.memory_space<vmem>>, vector<8x512xf32>
    %cst = arith.constant dense<0.000000e+00> : vector<8x128xf32>
    %13 = tpu.matmul %12, %3, %cst {dimension_numbers = #tpu.dot_dimension_numbers<[1], [0], [0], [1], [0, 0, 1, 1], [], []>} : vector<8x512xf32>, vector<512x128xf32>, vector<8x128xf32> -> vector<8x128xf32>
    %14 = arith.addf %13, %7 : vector<8x128xf32>
    %c0_12 = arith.constant 0 : index
    %c512 = arith.constant 512 : index
    %15 = vector.load %arg2[%c0_12, %c512] : memref<8x4096xf32, #tpu.memory_space<vmem>>, vector<8x512xf32>
    %cst_13 = arith.constant dense<0.000000e+00> : vector<8x128xf32>
    %16 = tpu.matmul %15, %3, %cst_13 {dimension_numbers = #tpu.dot_dimension_numbers<[1], [0], [0], [1], [0, 0, 1, 1], [], []>} : vector<8x512xf32>, vector<512x128xf32>, vector<8x128xf32> -> vector<8x128xf32>
    %17 = arith.addf %16, %7 : vector<8x128xf32>
    %c0_14 = arith.constant 0 : index
    %c1024 = arith.constant 1024 : index
    %18 = vector.load %arg2[%c0_14, %c1024] : memref<8x4096xf32, #tpu.memory_space<vmem>>, vector<8x512xf32>
    %cst_15 = arith.constant dense<0.000000e+00> : vector<8x128xf32>
    %19 = tpu.matmul %18, %3, %cst_15 {dimension_numbers = #tpu.dot_dimension_numbers<[1], [0], [0], [1], [0, 0, 1, 1], [], []>} : vector<8x512xf32>, vector<512x128xf32>, vector<8x128xf32> -> vector<8x128xf32>
    %20 = arith.addf %19, %7 : vector<8x128xf32>
    %c0_16 = arith.constant 0 : index
    %c1536 = arith.constant 1536 : index
    %21 = vector.load %arg2[%c0_16, %c1536] : memref<8x4096xf32, #tpu.memory_space<vmem>>, vector<8x512xf32>
    %cst_17 = arith.constant dense<0.000000e+00> : vector<8x128xf32>
    %22 = tpu.matmul %21, %3, %cst_17 {dimension_numbers = #tpu.dot_dimension_numbers<[1], [0], [0], [1], [0, 0, 1, 1], [], []>} : vector<8x512xf32>, vector<512x128xf32>, vector<8x128xf32> -> vector<8x128xf32>
    %23 = arith.addf %22, %7 : vector<8x128xf32>
    %c0_18 = arith.constant 0 : index
    %c2048 = arith.constant 2048 : index
    %24 = vector.load %arg2[%c0_18, %c2048] : memref<8x4096xf32, #tpu.memory_space<vmem>>, vector<8x512xf32>
    %cst_19 = arith.constant dense<0.000000e+00> : vector<8x128xf32>
    %25 = tpu.matmul %24, %3, %cst_19 {dimension_numbers = #tpu.dot_dimension_numbers<[1], [0], [0], [1], [0, 0, 1, 1], [], []>} : vector<8x512xf32>, vector<512x128xf32>, vector<8x128xf32> -> vector<8x128xf32>
    %26 = arith.addf %25, %7 : vector<8x128xf32>
    %c0_20 = arith.constant 0 : index
    %c2560 = arith.constant 2560 : index
    %27 = vector.load %arg2[%c0_20, %c2560] : memref<8x4096xf32, #tpu.memory_space<vmem>>, vector<8x512xf32>
    %cst_21 = arith.constant dense<0.000000e+00> : vector<8x128xf32>
    %28 = tpu.matmul %27, %3, %cst_21 {dimension_numbers = #tpu.dot_dimension_numbers<[1], [0], [0], [1], [0, 0, 1, 1], [], []>} : vector<8x512xf32>, vector<512x128xf32>, vector<8x128xf32> -> vector<8x128xf32>
    %29 = arith.addf %28, %7 : vector<8x128xf32>
    %c0_22 = arith.constant 0 : index
    %c3072 = arith.constant 3072 : index
    %30 = vector.load %arg2[%c0_22, %c3072] : memref<8x4096xf32, #tpu.memory_space<vmem>>, vector<8x512xf32>
    %cst_23 = arith.constant dense<0.000000e+00> : vector<8x128xf32>
    %31 = tpu.matmul %30, %3, %cst_23 {dimension_numbers = #tpu.dot_dimension_numbers<[1], [0], [0], [1], [0, 0, 1, 1], [], []>} : vector<8x512xf32>, vector<512x128xf32>, vector<8x128xf32> -> vector<8x128xf32>
    %32 = arith.addf %31, %7 : vector<8x128xf32>
    %c0_24 = arith.constant 0 : index
    %c3584 = arith.constant 3584 : index
    %33 = vector.load %arg2[%c0_24, %c3584] : memref<8x4096xf32, #tpu.memory_space<vmem>>, vector<8x512xf32>
    %cst_25 = arith.constant dense<0.000000e+00> : vector<8x128xf32>
    %34 = tpu.matmul %33, %3, %cst_25 {dimension_numbers = #tpu.dot_dimension_numbers<[1], [0], [0], [1], [0, 0, 1, 1], [], []>} : vector<8x512xf32>, vector<512x128xf32>, vector<8x128xf32> -> vector<8x128xf32>
    %35 = arith.addf %34, %7 : vector<8x128xf32>
    %c0_26 = arith.constant 0 : index
    %c0_27 = arith.constant 0 : index
    %36 = vector.load %arg9[%c0_26, %c0_27] : memref<8x32xf32, #tpu.memory_space<vmem>>, vector<8x32xf32>
    %c0_28 = arith.constant 0 : index
    %c0_29 = arith.constant 0 : index
    %37 = vector.load %arg10[%c0_28, %c0_29] : memref<8x32xf32, #tpu.memory_space<vmem>>, vector<8x32xf32>
    %cst_30 = arith.constant dense<0.000000e+00> : vector<8x128xf32>
    %38 = tpu.matmul %36, %4, %cst_30 {dimension_numbers = #tpu.dot_dimension_numbers<[1], [0], [0], [1], [0, 0, 1, 1], [], []>} : vector<8x32xf32>, vector<32x128xf32>, vector<8x128xf32> -> vector<8x128xf32>
    %39 = arith.addf %14, %38 : vector<8x128xf32>
    %40 = arith.negf %39 : vector<8x128xf32>
    %41 = math.exp %40 : vector<8x128xf32>
    %cst_31 = arith.constant 1.000000e+00 : f32
    %42 = vector.broadcast %cst_31 : f32 to vector<8x128xf32>
    %43 = arith.addf %42, %41 : vector<8x128xf32>
    %44 = arith.divf %42, %43 : vector<8x128xf32>
    %45 = vector.extract_strided_slice %44 {offsets = [0, 0], sizes = [8, 32], strides = [1, 1]} : vector<8x128xf32> to vector<8x32xf32>
    %46 = vector.extract_strided_slice %44 {offsets = [0, 32], sizes = [8, 32], strides = [1, 1]} : vector<8x128xf32> to vector<8x32xf32>
    %47 = vector.extract_strided_slice %44 {offsets = [0, 64], sizes = [8, 32], strides = [1, 1]} : vector<8x128xf32> to vector<8x32xf32>
    %cst_32 = arith.constant 2.000000e+00 : f32
    %48 = vector.broadcast %cst_32 : f32 to vector<8x32xf32>
    %49 = arith.mulf %48, %47 : vector<8x32xf32>
    %cst_33 = arith.constant 1.000000e+00 : f32
    %50 = vector.broadcast %cst_33 : f32 to vector<8x32xf32>
    %51 = arith.subf %49, %50 : vector<8x32xf32>
    %52 = vector.extract_strided_slice %44 {offsets = [0, 96], sizes = [8, 32], strides = [1, 1]} : vector<8x128xf32> to vector<8x32xf32>
    %53 = arith.mulf %46, %37 : vector<8x32xf32>
    %54 = arith.mulf %45, %51 : vector<8x32xf32>
    %55 = arith.addf %53, %54 : vector<8x32xf32>
    %56 = math.tanh %55 : vector<8x32xf32>
    %57 = arith.mulf %52, %56 : vector<8x32xf32>
    %58 = arith.mulf %57, %10 : vector<8x32xf32>
    %cst_34 = arith.constant dense<0.000000e+00> : vector<8xf32>
    %59 = vector.multi_reduction <add>, %58, %cst_34 [1] : vector<8x32xf32> to vector<8xf32>
    %60 = vector.shape_cast %59 : vector<8xf32> to vector<8x1xf32>
    %c0_35 = arith.constant 0 : index
    %c0_36 = arith.constant 0 : index
    %61 = vector.load %arg11[%c0_35, %c0_36] : memref<8x8xf32, #tpu.memory_space<vmem>>, vector<8x1xf32>
    tpu.vector_store %arg11[%c0_35, %c0_36], %60 {strides = array<i32>} : memref<8x8xf32, #tpu.memory_space<vmem>>, vector<8x1xf32>,
    %cst_37 = arith.constant dense<0.000000e+00> : vector<8x128xf32>
    %62 = tpu.matmul %57, %4, %cst_37 {dimension_numbers = #tpu.dot_dimension_numbers<[1], [0], [0], [1], [0, 0, 1, 1], [], []>} : vector<8x32xf32>, vector<32x128xf32>, vector<8x128xf32> -> vector<8x128xf32>
    %63 = arith.addf %17, %62 : vector<8x128xf32>
    %64 = arith.negf %63 : vector<8x128xf32>
    %65 = math.exp %64 : vector<8x128xf32>
    %cst_38 = arith.constant 1.000000e+00 : f32
    %66 = vector.broadcast %cst_38 : f32 to vector<8x128xf32>
    %67 = arith.addf %66, %65 : vector<8x128xf32>
    %68 = arith.divf %66, %67 : vector<8x128xf32>
    %69 = vector.extract_strided_slice %68 {offsets = [0, 0], sizes = [8, 32], strides = [1, 1]} : vector<8x128xf32> to vector<8x32xf32>
    %70 = vector.extract_strided_slice %68 {offsets = [0, 32], sizes = [8, 32], strides = [1, 1]} : vector<8x128xf32> to vector<8x32xf32>
    %71 = vector.extract_strided_slice %68 {offsets = [0, 64], sizes = [8, 32], strides = [1, 1]} : vector<8x128xf32> to vector<8x32xf32>
    %cst_39 = arith.constant 2.000000e+00 : f32
    %72 = vector.broadcast %cst_39 : f32 to vector<8x32xf32>
    %73 = arith.mulf %72, %71 : vector<8x32xf32>
    %cst_40 = arith.constant 1.000000e+00 : f32
    %74 = vector.broadcast %cst_40 : f32 to vector<8x32xf32>
    %75 = arith.subf %73, %74 : vector<8x32xf32>
    %76 = vector.extract_strided_slice %68 {offsets = [0, 96], sizes = [8, 32], strides = [1, 1]} : vector<8x128xf32> to vector<8x32xf32>
    %77 = arith.mulf %70, %55 : vector<8x32xf32>
    %78 = arith.mulf %69, %75 : vector<8x32xf32>
    %79 = arith.addf %77, %78 : vector<8x32xf32>
    %80 = math.tanh %79 : vector<8x32xf32>
    %81 = arith.mulf %76, %80 : vector<8x32xf32>
    %82 = arith.mulf %81, %10 : vector<8x32xf32>
    %cst_41 = arith.constant dense<0.000000e+00> : vector<8xf32>
    %83 = vector.multi_reduction <add>, %82, %cst_41 [1] : vector<8x32xf32> to vector<8xf32>
    %84 = vector.shape_cast %83 : vector<8xf32> to vector<8x1xf32>
    %c0_42 = arith.constant 0 : index
    %c1 = arith.constant 1 : index
    %85 = vector.load %arg11[%c0_42, %c1] : memref<8x8xf32, #tpu.memory_space<vmem>>, vector<8x1xf32>
    tpu.vector_store %arg11[%c0_42, %c1], %84 {strides = array<i32>} : memref<8x8xf32, #tpu.memory_space<vmem>>, vector<8x1xf32>,
    %cst_43 = arith.constant dense<0.000000e+00> : vector<8x128xf32>
    %86 = tpu.matmul %81, %4, %cst_43 {dimension_numbers = #tpu.dot_dimension_numbers<[1], [0], [0], [1], [0, 0, 1, 1], [], []>} : vector<8x32xf32>, vector<32x128xf32>, vector<8x128xf32> -> vector<8x128xf32>
    %87 = arith.addf %20, %86 : vector<8x128xf32>
    %88 = arith.negf %87 : vector<8x128xf32>
    %89 = math.exp %88 : vector<8x128xf32>
    %cst_44 = arith.constant 1.000000e+00 : f32
    %90 = vector.broadcast %cst_44 : f32 to vector<8x128xf32>
    %91 = arith.addf %90, %89 : vector<8x128xf32>
    %92 = arith.divf %90, %91 : vector<8x128xf32>
    %93 = vector.extract_strided_slice %92 {offsets = [0, 0], sizes = [8, 32], strides = [1, 1]} : vector<8x128xf32> to vector<8x32xf32>
    %94 = vector.extract_strided_slice %92 {offsets = [0, 32], sizes = [8, 32], strides = [1, 1]} : vector<8x128xf32> to vector<8x32xf32>
    %95 = vector.extract_strided_slice %92 {offsets = [0, 64], sizes = [8, 32], strides = [1, 1]} : vector<8x128xf32> to vector<8x32xf32>
    %cst_45 = arith.constant 2.000000e+00 : f32
    %96 = vector.broadcast %cst_45 : f32 to vector<8x32xf32>
    %97 = arith.mulf %96, %95 : vector<8x32xf32>
    %cst_46 = arith.constant 1.000000e+00 : f32
    %98 = vector.broadcast %cst_46 : f32 to vector<8x32xf32>
    %99 = arith.subf %97, %98 : vector<8x32xf32>
    %100 = vector.extract_strided_slice %92 {offsets = [0, 96], sizes = [8, 32], strides = [1, 1]} : vector<8x128xf32> to vector<8x32xf32>
    %101 = arith.mulf %94, %79 : vector<8x32xf32>
    %102 = arith.mulf %93, %99 : vector<8x32xf32>
    %103 = arith.addf %101, %102 : vector<8x32xf32>
    %104 = math.tanh %103 : vector<8x32xf32>
    %105 = arith.mulf %100, %104 : vector<8x32xf32>
    %106 = arith.mulf %105, %10 : vector<8x32xf32>
    %cst_47 = arith.constant dense<0.000000e+00> : vector<8xf32>
    %107 = vector.multi_reduction <add>, %106, %cst_47 [1] : vector<8x32xf32> to vector<8xf32>
    %108 = vector.shape_cast %107 : vector<8xf32> to vector<8x1xf32>
    %c0_48 = arith.constant 0 : index
    %c2 = arith.constant 2 : index
    %109 = vector.load %arg11[%c0_48, %c2] : memref<8x8xf32, #tpu.memory_space<vmem>>, vector<8x1xf32>
    tpu.vector_store %arg11[%c0_48, %c2], %108 {strides = array<i32>} : memref<8x8xf32, #tpu.memory_space<vmem>>, vector<8x1xf32>,
    %cst_49 = arith.constant dense<0.000000e+00> : vector<8x128xf32>
    %110 = tpu.matmul %105, %4, %cst_49 {dimension_numbers = #tpu.dot_dimension_numbers<[1], [0], [0], [1], [0, 0, 1, 1], [], []>} : vector<8x32xf32>, vector<32x128xf32>, vector<8x128xf32> -> vector<8x128xf32>
    %111 = arith.addf %23, %110 : vector<8x128xf32>
    %112 = arith.negf %111 : vector<8x128xf32>
    %113 = math.exp %112 : vector<8x128xf32>
    %cst_50 = arith.constant 1.000000e+00 : f32
    %114 = vector.broadcast %cst_50 : f32 to vector<8x128xf32>
    %115 = arith.addf %114, %113 : vector<8x128xf32>
    %116 = arith.divf %114, %115 : vector<8x128xf32>
    %117 = vector.extract_strided_slice %116 {offsets = [0, 0], sizes = [8, 32], strides = [1, 1]} : vector<8x128xf32> to vector<8x32xf32>
    %118 = vector.extract_strided_slice %116 {offsets = [0, 32], sizes = [8, 32], strides = [1, 1]} : vector<8x128xf32> to vector<8x32xf32>
    %119 = vector.extract_strided_slice %116 {offsets = [0, 64], sizes = [8, 32], strides = [1, 1]} : vector<8x128xf32> to vector<8x32xf32>
    %cst_51 = arith.constant 2.000000e+00 : f32
    %120 = vector.broadcast %cst_51 : f32 to vector<8x32xf32>
    %121 = arith.mulf %120, %119 : vector<8x32xf32>
    %cst_52 = arith.constant 1.000000e+00 : f32
    %122 = vector.broadcast %cst_52 : f32 to vector<8x32xf32>
    %123 = arith.subf %121, %122 : vector<8x32xf32>
    %124 = vector.extract_strided_slice %116 {offsets = [0, 96], sizes = [8, 32], strides = [1, 1]} : vector<8x128xf32> to vector<8x32xf32>
    %125 = arith.mulf %118, %103 : vector<8x32xf32>
    %126 = arith.mulf %117, %123 : vector<8x32xf32>
    %127 = arith.addf %125, %126 : vector<8x32xf32>
    %128 = math.tanh %127 : vector<8x32xf32>
    %129 = arith.mulf %124, %128 : vector<8x32xf32>
    %130 = arith.mulf %129, %10 : vector<8x32xf32>
    %cst_53 = arith.constant dense<0.000000e+00> : vector<8xf32>
    %131 = vector.multi_reduction <add>, %130, %cst_53 [1] : vector<8x32xf32> to vector<8xf32>
    %132 = vector.shape_cast %131 : vector<8xf32> to vector<8x1xf32>
    %c0_54 = arith.constant 0 : index
    %c3 = arith.constant 3 : index
    %133 = vector.load %arg11[%c0_54, %c3] : memref<8x8xf32, #tpu.memory_space<vmem>>, vector<8x1xf32>
    tpu.vector_store %arg11[%c0_54, %c3], %132 {strides = array<i32>} : memref<8x8xf32, #tpu.memory_space<vmem>>, vector<8x1xf32>,
    %cst_55 = arith.constant dense<0.000000e+00> : vector<8x128xf32>
    %134 = tpu.matmul %129, %4, %cst_55 {dimension_numbers = #tpu.dot_dimension_numbers<[1], [0], [0], [1], [0, 0, 1, 1], [], []>} : vector<8x32xf32>, vector<32x128xf32>, vector<8x128xf32> -> vector<8x128xf32>
    %135 = arith.addf %26, %134 : vector<8x128xf32>
    %136 = arith.negf %135 : vector<8x128xf32>
    %137 = math.exp %136 : vector<8x128xf32>
    %cst_56 = arith.constant 1.000000e+00 : f32
    %138 = vector.broadcast %cst_56 : f32 to vector<8x128xf32>
    %139 = arith.addf %138, %137 : vector<8x128xf32>
    %140 = arith.divf %138, %139 : vector<8x128xf32>
    %141 = vector.extract_strided_slice %140 {offsets = [0, 0], sizes = [8, 32], strides = [1, 1]} : vector<8x128xf32> to vector<8x32xf32>
    %142 = vector.extract_strided_slice %140 {offsets = [0, 32], sizes = [8, 32], strides = [1, 1]} : vector<8x128xf32> to vector<8x32xf32>
    %143 = vector.extract_strided_slice %140 {offsets = [0, 64], sizes = [8, 32], strides = [1, 1]} : vector<8x128xf32> to vector<8x32xf32>
    %cst_57 = arith.constant 2.000000e+00 : f32
    %144 = vector.broadcast %cst_57 : f32 to vector<8x32xf32>
    %145 = arith.mulf %144, %143 : vector<8x32xf32>
    %cst_58 = arith.constant 1.000000e+00 : f32
    %146 = vector.broadcast %cst_58 : f32 to vector<8x32xf32>
    %147 = arith.subf %145, %146 : vector<8x32xf32>
    %148 = vector.extract_strided_slice %140 {offsets = [0, 96], sizes = [8, 32], strides = [1, 1]} : vector<8x128xf32> to vector<8x32xf32>
    %149 = arith.mulf %142, %127 : vector<8x32xf32>
    %150 = arith.mulf %141, %147 : vector<8x32xf32>
    %151 = arith.addf %149, %150 : vector<8x32xf32>
    %152 = math.tanh %151 : vector<8x32xf32>
    %153 = arith.mulf %148, %152 : vector<8x32xf32>
    %154 = arith.mulf %153, %10 : vector<8x32xf32>
    %cst_59 = arith.constant dense<0.000000e+00> : vector<8xf32>
    %155 = vector.multi_reduction <add>, %154, %cst_59 [1] : vector<8x32xf32> to vector<8xf32>
    %156 = vector.shape_cast %155 : vector<8xf32> to vector<8x1xf32>
    %c0_60 = arith.constant 0 : index
    %c4 = arith.constant 4 : index
    %157 = vector.load %arg11[%c0_60, %c4] : memref<8x8xf32, #tpu.memory_space<vmem>>, vector<8x1xf32>
    tpu.vector_store %arg11[%c0_60, %c4], %156 {strides = array<i32>} : memref<8x8xf32, #tpu.memory_space<vmem>>, vector<8x1xf32>,
    %cst_61 = arith.constant dense<0.000000e+00> : vector<8x128xf32>
    %158 = tpu.matmul %153, %4, %cst_61 {dimension_numbers = #tpu.dot_dimension_numbers<[1], [0], [0], [1], [0, 0, 1, 1], [], []>} : vector<8x32xf32>, vector<32x128xf32>, vector<8x128xf32> -> vector<8x128xf32>
    %159 = arith.addf %29, %158 : vector<8x128xf32>
    %160 = arith.negf %159 : vector<8x128xf32>
    %161 = math.exp %160 : vector<8x128xf32>
    %cst_62 = arith.constant 1.000000e+00 : f32
    %162 = vector.broadcast %cst_62 : f32 to vector<8x128xf32>
    %163 = arith.addf %162, %161 : vector<8x128xf32>
    %164 = arith.divf %162, %163 : vector<8x128xf32>
    %165 = vector.extract_strided_slice %164 {offsets = [0, 0], sizes = [8, 32], strides = [1, 1]} : vector<8x128xf32> to vector<8x32xf32>
    %166 = vector.extract_strided_slice %164 {offsets = [0, 32], sizes = [8, 32], strides = [1, 1]} : vector<8x128xf32> to vector<8x32xf32>
    %167 = vector.extract_strided_slice %164 {offsets = [0, 64], sizes = [8, 32], strides = [1, 1]} : vector<8x128xf32> to vector<8x32xf32>
    %cst_63 = arith.constant 2.000000e+00 : f32
    %168 = vector.broadcast %cst_63 : f32 to vector<8x32xf32>
    %169 = arith.mulf %168, %167 : vector<8x32xf32>
    %cst_64 = arith.constant 1.000000e+00 : f32
    %170 = vector.broadcast %cst_64 : f32 to vector<8x32xf32>
    %171 = arith.subf %169, %170 : vector<8x32xf32>
    %172 = vector.extract_strided_slice %164 {offsets = [0, 96], sizes = [8, 32], strides = [1, 1]} : vector<8x128xf32> to vector<8x32xf32>
    %173 = arith.mulf %166, %151 : vector<8x32xf32>
    %174 = arith.mulf %165, %171 : vector<8x32xf32>
    %175 = arith.addf %173, %174 : vector<8x32xf32>
    %176 = math.tanh %175 : vector<8x32xf32>
    %177 = arith.mulf %172, %176 : vector<8x32xf32>
    %178 = arith.mulf %177, %10 : vector<8x32xf32>
    %cst_65 = arith.constant dense<0.000000e+00> : vector<8xf32>
    %179 = vector.multi_reduction <add>, %178, %cst_65 [1] : vector<8x32xf32> to vector<8xf32>
    %180 = vector.shape_cast %179 : vector<8xf32> to vector<8x1xf32>
    %c0_66 = arith.constant 0 : index
    %c5 = arith.constant 5 : index
    %181 = vector.load %arg11[%c0_66, %c5] : memref<8x8xf32, #tpu.memory_space<vmem>>, vector<8x1xf32>
    tpu.vector_store %arg11[%c0_66, %c5], %180 {strides = array<i32>} : memref<8x8xf32, #tpu.memory_space<vmem>>, vector<8x1xf32>,
    %cst_67 = arith.constant dense<0.000000e+00> : vector<8x128xf32>
    %182 = tpu.matmul %177, %4, %cst_67 {dimension_numbers = #tpu.dot_dimension_numbers<[1], [0], [0], [1], [0, 0, 1, 1], [], []>} : vector<8x32xf32>, vector<32x128xf32>, vector<8x128xf32> -> vector<8x128xf32>
    %183 = arith.addf %32, %182 : vector<8x128xf32>
    %184 = arith.negf %183 : vector<8x128xf32>
    %185 = math.exp %184 : vector<8x128xf32>
    %cst_68 = arith.constant 1.000000e+00 : f32
    %186 = vector.broadcast %cst_68 : f32 to vector<8x128xf32>
    %187 = arith.addf %186, %185 : vector<8x128xf32>
    %188 = arith.divf %186, %187 : vector<8x128xf32>
    %189 = vector.extract_strided_slice %188 {offsets = [0, 0], sizes = [8, 32], strides = [1, 1]} : vector<8x128xf32> to vector<8x32xf32>
    %190 = vector.extract_strided_slice %188 {offsets = [0, 32], sizes = [8, 32], strides = [1, 1]} : vector<8x128xf32> to vector<8x32xf32>
    %191 = vector.extract_strided_slice %188 {offsets = [0, 64], sizes = [8, 32], strides = [1, 1]} : vector<8x128xf32> to vector<8x32xf32>
    %cst_69 = arith.constant 2.000000e+00 : f32
    %192 = vector.broadcast %cst_69 : f32 to vector<8x32xf32>
    %193 = arith.mulf %192, %191 : vector<8x32xf32>
    %cst_70 = arith.constant 1.000000e+00 : f32
    %194 = vector.broadcast %cst_70 : f32 to vector<8x32xf32>
    %195 = arith.subf %193, %194 : vector<8x32xf32>
    %196 = vector.extract_strided_slice %188 {offsets = [0, 96], sizes = [8, 32], strides = [1, 1]} : vector<8x128xf32> to vector<8x32xf32>
    %197 = arith.mulf %190, %175 : vector<8x32xf32>
    %198 = arith.mulf %189, %195 : vector<8x32xf32>
    %199 = arith.addf %197, %198 : vector<8x32xf32>
    %200 = math.tanh %199 : vector<8x32xf32>
    %201 = arith.mulf %196, %200 : vector<8x32xf32>
    %202 = arith.mulf %201, %10 : vector<8x32xf32>
    %cst_71 = arith.constant dense<0.000000e+00> : vector<8xf32>
    %203 = vector.multi_reduction <add>, %202, %cst_71 [1] : vector<8x32xf32> to vector<8xf32>
    %204 = vector.shape_cast %203 : vector<8xf32> to vector<8x1xf32>
    %c0_72 = arith.constant 0 : index
    %c6 = arith.constant 6 : index
    %205 = vector.load %arg11[%c0_72, %c6] : memref<8x8xf32, #tpu.memory_space<vmem>>, vector<8x1xf32>
    tpu.vector_store %arg11[%c0_72, %c6], %204 {strides = array<i32>} : memref<8x8xf32, #tpu.memory_space<vmem>>, vector<8x1xf32>,
    %cst_73 = arith.constant dense<0.000000e+00> : vector<8x128xf32>
    %206 = tpu.matmul %201, %4, %cst_73 {dimension_numbers = #tpu.dot_dimension_numbers<[1], [0], [0], [1], [0, 0, 1, 1], [], []>} : vector<8x32xf32>, vector<32x128xf32>, vector<8x128xf32> -> vector<8x128xf32>
    %207 = arith.addf %35, %206 : vector<8x128xf32>
    %208 = arith.negf %207 : vector<8x128xf32>
    %209 = math.exp %208 : vector<8x128xf32>
    %cst_74 = arith.constant 1.000000e+00 : f32
    %210 = vector.broadcast %cst_74 : f32 to vector<8x128xf32>
    %211 = arith.addf %210, %209 : vector<8x128xf32>
    %212 = arith.divf %210, %211 : vector<8x128xf32>
    %213 = vector.extract_strided_slice %212 {offsets = [0, 0], sizes = [8, 32], strides = [1, 1]} : vector<8x128xf32> to vector<8x32xf32>
    %214 = vector.extract_strided_slice %212 {offsets = [0, 32], sizes = [8, 32], strides = [1, 1]} : vector<8x128xf32> to vector<8x32xf32>
    %215 = vector.extract_strided_slice %212 {offsets = [0, 64], sizes = [8, 32], strides = [1, 1]} : vector<8x128xf32> to vector<8x32xf32>
    %cst_75 = arith.constant 2.000000e+00 : f32
    %216 = vector.broadcast %cst_75 : f32 to vector<8x32xf32>
    %217 = arith.mulf %216, %215 : vector<8x32xf32>
    %cst_76 = arith.constant 1.000000e+00 : f32
    %218 = vector.broadcast %cst_76 : f32 to vector<8x32xf32>
    %219 = arith.subf %217, %218 : vector<8x32xf32>
    %220 = vector.extract_strided_slice %212 {offsets = [0, 96], sizes = [8, 32], strides = [1, 1]} : vector<8x128xf32> to vector<8x32xf32>
    %221 = arith.mulf %214, %199 : vector<8x32xf32>
    %222 = arith.mulf %213, %219 : vector<8x32xf32>
    %223 = arith.addf %221, %222 : vector<8x32xf32>
    %224 = math.tanh %223 : vector<8x32xf32>
    %225 = arith.mulf %220, %224 : vector<8x32xf32>
    %226 = arith.mulf %225, %10 : vector<8x32xf32>
    %cst_77 = arith.constant dense<0.000000e+00> : vector<8xf32>
    %227 = vector.multi_reduction <add>, %226, %cst_77 [1] : vector<8x32xf32> to vector<8xf32>
    %228 = vector.shape_cast %227 : vector<8xf32> to vector<8x1xf32>
    %c0_78 = arith.constant 0 : index
    %c7 = arith.constant 7 : index
    %229 = vector.load %arg11[%c0_78, %c7] : memref<8x8xf32, #tpu.memory_space<vmem>>, vector<8x1xf32>
    tpu.vector_store %arg11[%c0_78, %c7], %228 {strides = array<i32>} : memref<8x8xf32, #tpu.memory_space<vmem>>, vector<8x1xf32>,
    %c0_79 = arith.constant 0 : index
    %c0_80 = arith.constant 0 : index
    %230 = vector.load %arg9[%c0_79, %c0_80] : memref<8x32xf32, #tpu.memory_space<vmem>>, vector<8x32xf32>
    tpu.vector_store %arg9[%c0_79, %c0_80], %225 {strides = array<i32>} : memref<8x32xf32, #tpu.memory_space<vmem>>, vector<8x32xf32>,
    %c0_81 = arith.constant 0 : index
    %c0_82 = arith.constant 0 : index
    %231 = vector.load %arg10[%c0_81, %c0_82] : memref<8x32xf32, #tpu.memory_space<vmem>>, vector<8x32xf32>
    tpu.vector_store %arg10[%c0_81, %c0_82], %223 {strides = array<i32>} : memref<8x32xf32, #tpu.memory_space<vmem>>, vector<8x32xf32>,
    %c0_83 = arith.constant 0 : index
    %c0_84 = arith.constant 0 : index
    %232 = vector.load %arg11[%c0_83, %c0_84] : memref<8x8xf32, #tpu.memory_space<vmem>>, vector<8x8xf32>
    %233 = vector.broadcast %11 : vector<1x1xf32> to vector<8x8xf32>
    %234 = arith.addf %232, %233 : vector<8x8xf32>
    %235 = arith.negf %234 : vector<8x8xf32>
    %236 = math.exp %235 : vector<8x8xf32>
    %cst_85 = arith.constant 1.000000e+00 : f32
    %237 = vector.broadcast %cst_85 : f32 to vector<8x8xf32>
    %238 = arith.addf %237, %236 : vector<8x8xf32>
    %239 = arith.divf %237, %238 : vector<8x8xf32>
    %c0_86 = arith.constant 0 : index
    %c0_87 = arith.constant 0 : index
    %c0_88 = arith.constant 0 : index
    %240 = vector.load %arg8[%c0_86, %c0_87, %c0_88] : memref<1x8x8xf32, #tpu.memory_space<vmem>>, vector<1x8x8xf32>
    %241 = vector.shape_cast %240 : vector<1x8x8xf32> to vector<8x8xf32>
    %242 = vector.shape_cast %239 : vector<8x8xf32> to vector<1x8x8xf32>
    tpu.vector_store %arg8[%c0_86, %c0_87, %c0_88], %242 {strides = array<i32>} : memref<1x8x8xf32, #tpu.memory_space<vmem>>, vector<1x8x8xf32>,
    return
  }
  func.func @transform_0(%arg0: i32, %arg1: i32) -> (i32, i32) {
    %c0_i32 = arith.constant 0 : i32
    return %arg0, %arg1 : i32, i32
  }
  func.func @transform_1(%arg0: i32, %arg1: i32) -> (i32, i32) {
    %c0_i32 = arith.constant 0 : i32
    %c0_i32_0 = arith.constant 0 : i32
    %c0_i32_1 = arith.constant 0 : i32
    return %c0_i32, %c0_i32_0 : i32, i32
  }
  func.func @transform_2(%arg0: i32, %arg1: i32) -> (i32, i32) {
    %c0_i32 = arith.constant 0 : i32
    %c0_i32_0 = arith.constant 0 : i32
    %c0_i32_1 = arith.constant 0 : i32
    return %c0_i32, %c0_i32_0 : i32, i32
  }
  func.func @transform_3(%arg0: i32, %arg1: i32) -> (i32, i32) {
    %c0_i32 = arith.constant 0 : i32
    %c0_i32_0 = arith.constant 0 : i32
    %c0_i32_1 = arith.constant 0 : i32
    return %c0_i32, %c0_i32_0 : i32, i32
  }
  func.func @transform_4(%arg0: i32, %arg1: i32) -> (i32, i32) {
    %c0_i32 = arith.constant 0 : i32
    %c0_i32_0 = arith.constant 0 : i32
    %c0_i32_1 = arith.constant 0 : i32
    return %c0_i32, %c0_i32_0 : i32, i32
  }
  func.func @transform_5(%arg0: i32, %arg1: i32) -> (i32, i32) {
    %c0_i32 = arith.constant 0 : i32
    %c0_i32_0 = arith.constant 0 : i32
    %c0_i32_1 = arith.constant 0 : i32
    return %c0_i32, %c0_i32_0 : i32, i32
  }
  func.func @transform_6(%arg0: i32, %arg1: i32) -> (i32, i32, i32) {
    %c0_i32 = arith.constant 0 : i32
    %c0_i32_0 = arith.constant 0 : i32
    return %arg1, %arg0, %c0_i32 : i32, i32, i32
  }
}

</mosaic_0001>

<llo_original>
// kernel: tpu_custom_call.1
$region0: #{tpu_custom_call.1}
  #allocation0 [shape = 'u32[]', space=smem, size = 0x4, offset = 0x4, fixed_abs, tag = 'smem constant byte address 0x4 - core index']
  #allocation1 [shape = 'u32[144,128]{1,0:T(1,128)}', space=vmem, size = 0x12000, scoped, tag = 'internal scratch']
  #allocation2 [shape = 'f32[8,32]{1,0:T(8,128)}', space=vmem, size = 0x1000, scoped, tag = 'scratch operand']
  #allocation3 [shape = 'f32[8,32]{1,0:T(8,128)}', space=vmem, size = 0x1000, scoped, tag = 'scratch operand']
  #allocation4 [shape = 'f32[8,8]{1,0:T(8,128)}', space=vmem, size = 0x1000, scoped, tag = 'scratch operand']
  #allocation5 [shape = 'f32[1,1]{1,0:T(1,128)S(1)}', space=vmem, size = 0x200, scoped, tag = 'scoped memory for tpu_custom_call.1']
  %s0 = inlined_call_operand.hbm [shape: f32[8,4096], index: 0, kind: input, shape index: {}]
  %s1 = inlined_call_operand.hbm [shape: f32[512,128], index: 1, kind: input, shape index: {}]
  %s2 = inlined_call_operand.hbm [shape: f32[32,128], index: 2, kind: input, shape index: {}]
  %s3 = inlined_call_operand.vmem [shape: f32[1,128], index: 3, kind: input, shape index: {}]
  %s4 = inlined_call_operand.vmem [shape: f32[1,32], index: 4, kind: input, shape index: {}]
  %s5 = inlined_call_operand.<no memory space> [shape: f32[1,1], index: 5, kind: input, shape index: {}]
  %s6 = inlined_call_operand.hbm [shape: f32[1,8,8], index: 6, kind: output, shape index: {}]
  %s7 = sld [smem:[#allocation0]]
  $region50: #{tpu_custom_call.1} parent=0
    _
  %s9 = ssub.s32 1, %s7
  %s10 = scalar_select 0, %s9, %s7
  %v11 = vstv %s5
  %12 = vst [vmem:[#allocation5] sm:$0x1] %v11
  $region1: #{tpu_custom_call.1} parent=0
    #allocation6 [shape = 'u8[131072]{0}', space=vmem, size = 0x20000, scoped, tag = 'input window, operand 0, single buffered']
    #allocation7 [shape = 's32[1]{0}', space=sflag, size = 0x4, scoped, tag = 'scoped memory for tpu_custom_call.1']
    #allocation8 [shape = 's32[1]{0}', space=sflag, size = 0x4, scoped, tag = 'scoped memory for tpu_custom_call.1']
    #allocation9 [shape = 'u8[262144]{0}', space=vmem, size = 0x40000, scoped, tag = 'input window, operand 1, single buffered']
    #allocation10 [shape = 's32[1]{0}', space=sflag, size = 0x4, scoped, tag = 'scoped memory for tpu_custom_call.1']
    #allocation11 [shape = 'u8[16384]{0}', space=vmem, size = 0x4000, scoped, tag = 'input window, operand 2, single buffered']
    #allocation12 [shape = 'u8[4096]{0}', space=vmem, size = 0x1000, scoped, tag = 'output window, operand 0, single buffered']
    %13 = vsyncpa [#allocation7], 0
    %14 = vsyncpa [#allocation10], 0
    %15 = vsyncpa [#allocation8], 0
    // Predicated region
    $region2: #{tpu_custom_call.1} parent=1 // pred_check
      _
    $region3: #{tpu_custom_call.1} parent=1 // pred_check_branch
      %17 = sbr.rel (0) target = $region5
    $region4: #{tpu_custom_call.1} parent=1 // pred_region
      %s19 = ssub.s32 4096, 4096
      %20 = vsyncadd [#allocation7], %s19
      %s22 = sshll.u32 [#allocation6], 4
      %s23 = int_to_ptr.vmem [resolvable:$true] %s22
      %25 = dma.hbm_to_vmem [thread:$0]  %s0, 4096, %s23, [#allocation7]
    $region5: #{tpu_custom_call.1} parent=1 // pred_fallthru
      _
    // Predicated region
    $region6: #{tpu_custom_call.1} parent=1 // pred_check
      _
    $region7: #{tpu_custom_call.1} parent=1 // pred_check_branch
      %27 = sbr.rel (0) target = $region9
    $region8: #{tpu_custom_call.1} parent=1 // pred_region
      %s29 = ssub.s32 8192, 8192
      %30 = vsyncadd [#allocation10], %s29
      %s31 = sshll.u32 [#allocation9], 4
      %s32 = int_to_ptr.vmem [resolvable:$true] %s31
      %37 = dma.hbm_to_vmem [thread:$0]  %s1, 8192, %s32, [#allocation10], 128, 128, 8
    $region9: #{tpu_custom_call.1} parent=1 // pred_fallthru
      _
    // Predicated region
    $region10: #{tpu_custom_call.1} parent=1 // pred_check
      _
    $region11: #{tpu_custom_call.1} parent=1 // pred_check_branch
      %39 = sbr.rel (0) target = $region13
    $region12: #{tpu_custom_call.1} parent=1 // pred_region
      %s41 = ssub.s32 512, 512
      %42 = vsyncadd [#allocation10], %s41
      %s43 = sshll.u32 [#allocation11], 4
      %s44 = int_to_ptr.vmem [resolvable:$true] %s43
      %49 = dma.hbm_to_vmem [thread:$0]  %s2, 512, %s44, [#allocation10], 128, 128, 8
    $region13: #{tpu_custom_call.1} parent=1 // pred_fallthru
      _
    // Predicated region
    $region14: #{tpu_custom_call.1} parent=1 // pred_check
      _
    $region15: #{tpu_custom_call.1} parent=1 // pred_check_branch
      %51 = sbr.rel (0) target = $region17
    $region16: #{tpu_custom_call.1} parent=1 // pred_region
      _
    $region17: #{tpu_custom_call.1} parent=1 // pred_fallthru
      _
    // Predicated region
    $region18: #{tpu_custom_call.1} parent=1 // pred_check
      _
    $region19: #{tpu_custom_call.1} parent=1 // pred_check_branch
      %53 = sbr.rel (0) target = $region21
    $region20: #{tpu_custom_call.1} parent=1 // pred_region
      _
    $region21: #{tpu_custom_call.1} parent=1 // pred_fallthru
      _
    // Predicated region
    $region22: #{tpu_custom_call.1} parent=1 // pred_check
      _
    $region23: #{tpu_custom_call.1} parent=1 // pred_check_branch
      %55 = sbr.rel (0) target = $region25
    $region24: #{tpu_custom_call.1} parent=1 // pred_region
      _
    $region25: #{tpu_custom_call.1} parent=1 // pred_fallthru
      _
    // Predicated region
    $region26: #{tpu_custom_call.1} parent=1 // pred_check
      _
    $region27: #{tpu_custom_call.1} parent=1 // pred_check_branch
      %57 = sbr.rel (0) target = $region29
    $region28: #{tpu_custom_call.1} parent=1 // pred_region
      %58 = dma.done [#allocation7], 4096
    $region29: #{tpu_custom_call.1} parent=1 // pred_fallthru
      _
    // Predicated region
    $region30: #{tpu_custom_call.1} parent=1 // pred_check
      _
    $region31: #{tpu_custom_call.1} parent=1 // pred_check_branch
      %60 = sbr.rel (0) target = $region33
    $region32: #{tpu_custom_call.1} parent=1 // pred_region
      %61 = dma.done [#allocation10], 8192
    $region33: #{tpu_custom_call.1} parent=1 // pred_fallthru
      _
    // Predicated region
    $region34: #{tpu_custom_call.1} parent=1 // pred_check
      _
    $region35: #{tpu_custom_call.1} parent=1 // pred_check_branch
      %63 = sbr.rel (0) target = $region37
    $region36: #{tpu_custom_call.1} parent=1 // pred_region
      %64 = dma.done [#allocation10], 512
    $region37: #{tpu_custom_call.1} parent=1 // pred_fallthru
      _
    %p65 = scmp.eq.s32.totalorder 0, 0
    // Predicated region
    $region38: #{tpu_custom_call.1} parent=1 // pred_check
      %p66 = pneg %p65
    $region39: #{tpu_custom_call.1} parent=1 // pred_check_branch
      %68 = sbr.rel (%p66) target = $region41
    $region40: #{tpu_custom_call.1} parent=1 // pred_region
      %vm69 = vcmask 261120
      %70 = vst.msk [vmem:[#allocation2] sm:$0xff] %vm69, 0.0
      %71 = vst.msk [vmem:[#allocation3] sm:$0xff] %vm69, 0.0
    $region41: #{tpu_custom_call.1} parent=1 // pred_fallthru
      _
    %v72 = vld [vmem:[#allocation9] sm:$0xff]
    %v73 = vld [vmem:[#allocation9 + $0x8] sm:$0xff]
    %v74 = vld [vmem:[#allocation9 + $0x10] sm:$0xff]
    %v75 = vld [vmem:[#allocation9 + $0x18] sm:$0xff]
    %v76 = vld [vmem:[#allocation9 + $0x20] sm:$0xff]
    %v77 = vld [vmem:[#allocation9 + $0x28] sm:$0xff]
    %v78 = vld [vmem:[#allocation9 + $0x30] sm:$0xff]
    %v79 = vld [vmem:[#allocation9 + $0x38] sm:$0xff]
    %v80 = vld [vmem:[#allocation9 + $0x40] sm:$0xff]
    %v81 = vld [vmem:[#allocation9 + $0x48] sm:$0xff]
    %v82 = vld [vmem:[#allocation9 + $0x50] sm:$0xff]
    %v83 = vld [vmem:[#allocation9 + $0x58] sm:$0xff]
    %v84 = vld [vmem:[#allocation9 + $0x60] sm:$0xff]
    %v85 = vld [vmem:[#allocation9 + $0x68] sm:$0xff]
    %v86 = vld [vmem:[#allocation9 + $0x70] sm:$0xff]
    %v87 = vld [vmem:[#allocation9 + $0x78] sm:$0xff]
    %v88 = vld [vmem:[#allocation9 + $0x80] sm:$0xff]
    %v89 = vld [vmem:[#allocation9 + $0x88] sm:$0xff]
    %v90 = vld [vmem:[#allocation9 + $0x90] sm:$0xff]
    %v91 = vld [vmem:[#allocation9 + $0x98] sm:$0xff]
    %v92 = vld [vmem:[#allocation9 + $0xa0] sm:$0xff]
    %v93 = vld [vmem:[#allocation9 + $0xa8] sm:$0xff]
    %v94 = vld [vmem:[#allocation9 + $0xb0] sm:$0xff]
    %v95 = vld [vmem:[#allocation9 + $0xb8] sm:$0xff]
    %v96 = vld [vmem:[#allocation9 + $0xc0] sm:$0xff]
    %v97 = vld [vmem:[#allocation9 + $0xc8] sm:$0xff]
    %v98 = vld [vmem:[#allocation9 + $0xd0] sm:$0xff]
    %v99 = vld [vmem:[#allocation9 + $0xd8] sm:$0xff]
    %v100 = vld [vmem:[#allocation9 + $0xe0] sm:$0xff]
    %v101 = vld [vmem:[#allocation9 + $0xe8] sm:$0xff]
    %v102 = vld [vmem:[#allocation9 + $0xf0] sm:$0xff]
    %v103 = vld [vmem:[#allocation9 + $0xf8] sm:$0xff]
    %v104 = vld [vmem:[#allocation9 + $0x100] sm:$0xff]
    %v105 = vld [vmem:[#allocation9 + $0x108] sm:$0xff]
    %v106 = vld [vmem:[#allocation9 + $0x110] sm:$0xff]
    %v107 = vld [vmem:[#allocation9 + $0x118] sm:$0xff]
    %v108 = vld [vmem:[#allocation9 + $0x120] sm:$0xff]
    %v109 = vld [vmem:[#allocation9 + $0x128] sm:$0xff]
    %v110 = vld [vmem:[#allocation9 + $0x130] sm:$0xff]
    %v111 = vld [vmem:[#allocation9 + $0x138] sm:$0xff]
    %v112 = vld [vmem:[#allocation9 + $0x140] sm:$0xff]
    %v113 = vld [vmem:[#allocation9 + $0x148] sm:$0xff]
    %v114 = vld [vmem:[#allocation9 + $0x150] sm:$0xff]
    %v115 = vld [vmem:[#allocation9 + $0x158] sm:$0xff]
    %v116 = vld [vmem:[#allocation9 + $0x160] sm:$0xff]
    %v117 = vld [vmem:[#allocation9 + $0x168] sm:$0xff]
    %v118 = vld [vmem:[#allocation9 + $0x170] sm:$0xff]
    %v119 = vld [vmem:[#allocation9 + $0x178] sm:$0xff]
    %v120 = vld [vmem:[#allocation9 + $0x180] sm:$0xff]
    %v121 = vld [vmem:[#allocation9 + $0x188] sm:$0xff]
    %v122 = vld [vmem:[#allocation9 + $0x190] sm:$0xff]
    %v123 = vld [vmem:[#allocation9 + $0x198] sm:$0xff]
    %v124 = vld [vmem:[#allocation9 + $0x1a0] sm:$0xff]
    %v125 = vld [vmem:[#allocation9 + $0x1a8] sm:$0xff]
    %v126 = vld [vmem:[#allocation9 + $0x1b0] sm:$0xff]
    %v127 = vld [vmem:[#allocation9 + $0x1b8] sm:$0xff]
    %v128 = vld [vmem:[#allocation9 + $0x1c0] sm:$0xff]
    %v129 = vld [vmem:[#allocation9 + $0x1c8] sm:$0xff]
    %v130 = vld [vmem:[#allocation9 + $0x1d0] sm:$0xff]
    %v131 = vld [vmem:[#allocation9 + $0x1d8] sm:$0xff]
    %v132 = vld [vmem:[#allocation9 + $0x1e0] sm:$0xff]
    %v133 = vld [vmem:[#allocation9 + $0x1e8] sm:$0xff]
    %v134 = vld [vmem:[#allocation9 + $0x1f0] sm:$0xff]
    %v135 = vld [vmem:[#allocation9 + $0x1f8] sm:$0xff]
    %v136 = vld [vmem:[#allocation11] sm:$0xff]
    %v137 = vld [vmem:[#allocation11 + $0x8] sm:$0xff]
    %v138 = vld [vmem:[#allocation11 + $0x10] sm:$0xff]
    %v139 = vld [vmem:[#allocation11 + $0x18] sm:$0xff]
    %v140 = vld [vmem:[%s3] sm:$0x1]
    %v142 = vlaneseq
    %v143 = vshrl.u32 %v142, 7
    %v144 = vsub.s32 0, %v143
    %v145 = vrot.slane %v140, %v144
    %v147 = vld [vmem:[%s4] sm:$0x1]
    %v149 = vlaneseq
    %v150 = vshrl.u32 %v149, 7
    %v151 = vsub.s32 0, %v150
    %v152 = vrot.slane %v147, %v151
    %v153 = vld [vmem:[#allocation5] sm:$0x1]
    %v154 = vld [vmem:[#allocation6] sm:$0xff]
    %v155 = vld [vmem:[#allocation6 + $0x8] sm:$0xff]
    %v156 = vld [vmem:[#allocation6 + $0x10] sm:$0xff]
    %v157 = vld [vmem:[#allocation6 + $0x18] sm:$0xff]
    %158 = vmatprep.subr.mxu0 0.0
    %159 = vmatpush1.msra.mxu0 %v87
    %160 = vmatprep.subr.mxu0 0.0
    %161 = vmatpush1.msra.mxu0 %v86
    %162 = vmatprep.subr.mxu0 0.0
    %163 = vmatpush1.msra.mxu0 %v85
    %164 = vmatprep.subr.mxu0 0.0
    %165 = vmatpush1.msra.mxu0 %v84
    %166 = vmatprep.subr.mxu0 0.0
    %167 = vmatpush1.msra.mxu0 %v83
    %168 = vmatprep.subr.mxu0 0.0
    %169 = vmatpush1.msra.mxu0 %v82
    %170 = vmatprep.subr.mxu0 0.0
    %171 = vmatpush1.msra.mxu0 %v81
    %172 = vmatprep.subr.mxu0 0.0
    %173 = vmatpush1.msra.mxu0 %v80
    %174 = vmatprep.subr.mxu0 0.0
    %175 = vmatpush1.msra.mxu0 %v79
    %176 = vmatprep.subr.mxu0 0.0
    %177 = vmatpush1.msra.mxu0 %v78
    %178 = vmatprep.subr.mxu0 0.0
    %179 = vmatpush1.msra.mxu0 %v77
    %180 = vmatprep.subr.mxu0 0.0
    %181 = vmatpush1.msra.mxu0 %v76
    %182 = vmatprep.subr.mxu0 0.0
    %183 = vmatpush1.msra.mxu0 %v75
    %184 = vmatprep.subr.mxu0 0.0
    %185 = vmatpush1.msra.mxu0 %v74
    %186 = vmatprep.subr.mxu0 0.0
    %187 = vmatpush1.msra.mxu0 %v73
    %188 = vmatprep.subr.mxu0 0.0
    %189 = vmatpush1.msra.mxu0 %v72
    %190 = vmatprep.subr.mxu0 0.0
    %191 = vmatpush2.msra.mxu0 %v103
    %192 = vmatprep.subr.mxu0 0.0
    %193 = vmatpush2.msra.mxu0 %v102
    %194 = vmatprep.subr.mxu0 0.0
    %195 = vmatpush2.msra.mxu0 %v101
    %196 = vmatprep.subr.mxu0 0.0
    %197 = vmatpush2.msra.mxu0 %v100
    %198 = vmatprep.subr.mxu0 0.0
    %199 = vmatpush2.msra.mxu0 %v99
    %200 = vmatprep.subr.mxu0 0.0
    %201 = vmatpush2.msra.mxu0 %v98
    %202 = vmatprep.subr.mxu0 0.0
    %203 = vmatpush2.msra.mxu0 %v97
    %204 = vmatprep.subr.mxu0 0.0
    %205 = vmatpush2.msra.mxu0 %v96
    %206 = vmatprep.subr.mxu0 0.0
    %207 = vmatpush2.msra.mxu0 %v95
    %208 = vmatprep.subr.mxu0 0.0
    %209 = vmatpush2.msra.mxu0 %v94
    %210 = vmatprep.subr.mxu0 0.0
    %211 = vmatpush2.msra.mxu0 %v93
    %212 = vmatprep.subr.mxu0 0.0
    %213 = vmatpush2.msra.mxu0 %v92
    %214 = vmatprep.subr.mxu0 0.0
    %215 = vmatpush2.msra.mxu0 %v91
    %216 = vmatprep.subr.mxu0 0.0
    %217 = vmatpush2.msra.mxu0 %v90
    %218 = vmatprep.subr.mxu0 0.0
    %219 = vmatpush2.msra.mxu0 %v89
    %220 = vmatprep.subr.mxu0 0.0
    %221 = vmatpush2.msra.mxu0 %v88
    %222 = vmatprep.mubr.f32.mxu0 %v155
    %223 = vmatmul.mubr.f32.gmra.mxu0 %v154
    %v224 = vpop.f32.mrf.mxu0
    %v225 = vadd.f32 %v145, %v224
    %v226 = vpop.f32.mrf.mxu0
    %227 = vdwg.mxu0
    %228 = vmatprep.subr.mxu0 0.0
    %229 = vmatpush1.msra.mxu0 %v119
    %230 = vmatprep.subr.mxu0 0.0
    %231 = vmatpush1.msra.mxu0 %v118
    %232 = vmatprep.subr.mxu0 0.0
    %233 = vmatpush1.msra.mxu0 %v117
    %234 = vmatprep.subr.mxu0 0.0
    %235 = vmatpush1.msra.mxu0 %v116
    %236 = vmatprep.subr.mxu0 0.0
    %237 = vmatpush1.msra.mxu0 %v115
    %238 = vmatprep.subr.mxu0 0.0
    %239 = vmatpush1.msra.mxu0 %v114
    %240 = vmatprep.subr.mxu0 0.0
    %241 = vmatpush1.msra.mxu0 %v113
    %242 = vmatprep.subr.mxu0 0.0
    %243 = vmatpush1.msra.mxu0 %v112
    %244 = vmatprep.subr.mxu0 0.0
    %245 = vmatpush1.msra.mxu0 %v111
    %246 = vmatprep.subr.mxu0 0.0
    %247 = vmatpush1.msra.mxu0 %v110
    %248 = vmatprep.subr.mxu0 0.0
    %249 = vmatpush1.msra.mxu0 %v109
    %250 = vmatprep.subr.mxu0 0.0
    %251 = vmatpush1.msra.mxu0 %v108
    %252 = vmatprep.subr.mxu0 0.0
    %253 = vmatpush1.msra.mxu0 %v107
    %254 = vmatprep.subr.mxu0 0.0
    %255 = vmatpush1.msra.mxu0 %v106
    %256 = vmatprep.subr.mxu0 0.0
    %257 = vmatpush1.msra.mxu0 %v105
    %258 = vmatprep.subr.mxu0 0.0
    %259 = vmatpush1.msra.mxu0 %v104
    %260 = vmatprep.subr.mxu0 0.0
    %261 = vmatpush2.msra.mxu0 %v135
    %262 = vmatprep.subr.mxu0 0.0
    %263 = vmatpush2.msra.mxu0 %v134
    %264 = vmatprep.subr.mxu0 0.0
    %265 = vmatpush2.msra.mxu0 %v133
    %266 = vmatprep.subr.mxu0 0.0
    %267 = vmatpush2.msra.mxu0 %v132
    %268 = vmatprep.subr.mxu0 0.0
    %269 = vmatpush2.msra.mxu0 %v131
    %270 = vmatprep.subr.mxu0 0.0
    %271 = vmatpush2.msra.mxu0 %v130
    %272 = vmatprep.subr.mxu0 0.0
    %273 = vmatpush2.msra.mxu0 %v129
    %274 = vmatprep.subr.mxu0 0.0
    %275 = vmatpush2.msra.mxu0 %v128
    %276 = vmatprep.subr.mxu0 0.0
    %277 = vmatpush2.msra.mxu0 %v127
    %278 = vmatprep.subr.mxu0 0.0
    %279 = vmatpush2.msra.mxu0 %v126
    %280 = vmatprep.subr.mxu0 0.0
    %281 = vmatpush2.msra.mxu0 %v125
    %282 = vmatprep.subr.mxu0 0.0
    %283 = vmatpush2.msra.mxu0 %v124
    %284 = vmatprep.subr.mxu0 0.0
    %285 = vmatpush2.msra.mxu0 %v123
    %286 = vmatprep.subr.mxu0 0.0
    %287 = vmatpush2.msra.mxu0 %v122
    %288 = vmatprep.subr.mxu0 0.0
    %289 = vmatpush2.msra.mxu0 %v121
    %290 = vmatprep.subr.mxu0 0.0
    %291 = vmatpush2.msra.mxu0 %v120
    %292 = vmatprep.mubr.f32.mxu0 %v157
    %293 = vmatmul.mubr.f32.gmra.mxu0 %v156
    %v294 = vpop.f32.mrf.mxu0
    %v295 = vadd.f32 %v225, %v294
    %v296 = vpop.f32.mrf.mxu0
    %297 = vdwg.mxu0
    %v298 = vld [vmem:[#allocation6 + $0x20] sm:$0xff]
    %v299 = vld [vmem:[#allocation6 + $0x28] sm:$0xff]
    %v300 = vld [vmem:[#allocation6 + $0x30] sm:$0xff]
    %v301 = vld [vmem:[#allocation6 + $0x38] sm:$0xff]
    %302 = vmatprep.subr.mxu0 0.0
    %303 = vmatpush1.msra.mxu0 %v87
    %304 = vmatprep.subr.mxu0 0.0
    %305 = vmatpush1.msra.mxu0 %v86
    %306 = vmatprep.subr.mxu0 0.0
    %307 = vmatpush1.msra.mxu0 %v85
    %308 = vmatprep.subr.mxu0 0.0
    %309 = vmatpush1.msra.mxu0 %v84
    %310 = vmatprep.subr.mxu0 0.0
    %311 = vmatpush1.msra.mxu0 %v83
    %312 = vmatprep.subr.mxu0 0.0
    %313 = vmatpush1.msra.mxu0 %v82
    %314 = vmatprep.subr.mxu0 0.0
    %315 = vmatpush1.msra.mxu0 %v81
    %316 = vmatprep.subr.mxu0 0.0
    %317 = vmatpush1.msra.mxu0 %v80
    %318 = vmatprep.subr.mxu0 0.0
    %319 = vmatpush1.msra.mxu0 %v79
    %320 = vmatprep.subr.mxu0 0.0
    %321 = vmatpush1.msra.mxu0 %v78
    %322 = vmatprep.subr.mxu0 0.0
    %323 = vmatpush1.msra.mxu0 %v77
    %324 = vmatprep.subr.mxu0 0.0
    %325 = vmatpush1.msra.mxu0 %v76
    %326 = vmatprep.subr.mxu0 0.0
    %327 = vmatpush1.msra.mxu0 %v75
    %328 = vmatprep.subr.mxu0 0.0
    %329 = vmatpush1.msra.mxu0 %v74
    %330 = vmatprep.subr.mxu0 0.0
    %331 = vmatpush1.msra.mxu0 %v73
    %332 = vmatprep.subr.mxu0 0.0
    %333 = vmatpush1.msra.mxu0 %v72
    %334 = vmatprep.subr.mxu0 0.0
    %335 = vmatpush2.msra.mxu0 %v103
    %336 = vmatprep.subr.mxu0 0.0
    %337 = vmatpush2.msra.mxu0 %v102
    %338 = vmatprep.subr.mxu0 0.0
    %339 = vmatpush2.msra.mxu0 %v101
    %340 = vmatprep.subr.mxu0 0.0
    %341 = vmatpush2.msra.mxu0 %v100
    %342 = vmatprep.subr.mxu0 0.0
    %343 = vmatpush2.msra.mxu0 %v99
    %344 = vmatprep.subr.mxu0 0.0
    %345 = vmatpush2.msra.mxu0 %v98
    %346 = vmatprep.subr.mxu0 0.0
    %347 = vmatpush2.msra.mxu0 %v97
    %348 = vmatprep.subr.mxu0 0.0
    %349 = vmatpush2.msra.mxu0 %v96
    %350 = vmatprep.subr.mxu0 0.0
    %351 = vmatpush2.msra.mxu0 %v95
    %352 = vmatprep.subr.mxu0 0.0
    %353 = vmatpush2.msra.mxu0 %v94
    %354 = vmatprep.subr.mxu0 0.0
    %355 = vmatpush2.msra.mxu0 %v93
    %356 = vmatprep.subr.mxu0 0.0
    %357 = vmatpush2.msra.mxu0 %v92
    %358 = vmatprep.subr.mxu0 0.0
    %359 = vmatpush2.msra.mxu0 %v91
    %360 = vmatprep.subr.mxu0 0.0
    %361 = vmatpush2.msra.mxu0 %v90
    %362 = vmatprep.subr.mxu0 0.0
    %363 = vmatpush2.msra.mxu0 %v89
    %364 = vmatprep.subr.mxu0 0.0
    %365 = vmatpush2.msra.mxu0 %v88
    %366 = vmatprep.mubr.f32.mxu0 %v299
    %367 = vmatmul.mubr.f32.gmra.mxu0 %v298
    %v368 = vpop.f32.mrf.mxu0
    %v369 = vadd.f32 %v145, %v368
    %v370 = vpop.f32.mrf.mxu0
    %371 = vdwg.mxu0
    %372 = vmatprep.subr.mxu0 0.0
    %373 = vmatpush1.msra.mxu0 %v119
    %374 = vmatprep.subr.mxu0 0.0
    %375 = vmatpush1.msra.mxu0 %v118
    %376 = vmatprep.subr.mxu0 0.0
    %377 = vmatpush1.msra.mxu0 %v117
    %378 = vmatprep.subr.mxu0 0.0
    %379 = vmatpush1.msra.mxu0 %v116
    %380 = vmatprep.subr.mxu0 0.0
    %381 = vmatpush1.msra.mxu0 %v115
    %382 = vmatprep.subr.mxu0 0.0
    %383 = vmatpush1.msra.mxu0 %v114
    %384 = vmatprep.subr.mxu0 0.0
    %385 = vmatpush1.msra.mxu0 %v113
    %386 = vmatprep.subr.mxu0 0.0
    %387 = vmatpush1.msra.mxu0 %v112
    %388 = vmatprep.subr.mxu0 0.0
    %389 = vmatpush1.msra.mxu0 %v111
    %390 = vmatprep.subr.mxu0 0.0
    %391 = vmatpush1.msra.mxu0 %v110
    %392 = vmatprep.subr.mxu0 0.0
    %393 = vmatpush1.msra.mxu0 %v109
    %394 = vmatprep.subr.mxu0 0.0
    %395 = vmatpush1.msra.mxu0 %v108
    %396 = vmatprep.subr.mxu0 0.0
    %397 = vmatpush1.msra.mxu0 %v107
    %398 = vmatprep.subr.mxu0 0.0
    %399 = vmatpush1.msra.mxu0 %v106
    %400 = vmatprep.subr.mxu0 0.0
    %401 = vmatpush1.msra.mxu0 %v105
    %402 = vmatprep.subr.mxu0 0.0
    %403 = vmatpush1.msra.mxu0 %v104
    %404 = vmatprep.subr.mxu0 0.0
    %405 = vmatpush2.msra.mxu0 %v135
    %406 = vmatprep.subr.mxu0 0.0
    %407 = vmatpush2.msra.mxu0 %v134
    %408 = vmatprep.subr.mxu0 0.0
    %409 = vmatpush2.msra.mxu0 %v133
    %410 = vmatprep.subr.mxu0 0.0
    %411 = vmatpush2.msra.mxu0 %v132
    %412 = vmatprep.subr.mxu0 0.0
    %413 = vmatpush2.msra.mxu0 %v131
    %414 = vmatprep.subr.mxu0 0.0
    %415 = vmatpush2.msra.mxu0 %v130
    %416 = vmatprep.subr.mxu0 0.0
    %417 = vmatpush2.msra.mxu0 %v129
    %418 = vmatprep.subr.mxu0 0.0
    %419 = vmatpush2.msra.mxu0 %v128
    %420 = vmatprep.subr.mxu0 0.0
    %421 = vmatpush2.msra.mxu0 %v127
    %422 = vmatprep.subr.mxu0 0.0
    %423 = vmatpush2.msra.mxu0 %v126
    %424 = vmatprep.subr.mxu0 0.0
    %425 = vmatpush2.msra.mxu0 %v125
    %426 = vmatprep.subr.mxu0 0.0
    %427 = vmatpush2.msra.mxu0 %v124
    %428 = vmatprep.subr.mxu0 0.0
    %429 = vmatpush2.msra.mxu0 %v123
    %430 = vmatprep.subr.mxu0 0.0
    %431 = vmatpush2.msra.mxu0 %v122
    %432 = vmatprep.subr.mxu0 0.0
    %433 = vmatpush2.msra.mxu0 %v121
    %434 = vmatprep.subr.mxu0 0.0
    %435 = vmatpush2.msra.mxu0 %v120
    %436 = vmatprep.mubr.f32.mxu0 %v301
    %437 = vmatmul.mubr.f32.gmra.mxu0 %v300
    %v438 = vpop.f32.mrf.mxu0
    %v439 = vadd.f32 %v369, %v438
    %v440 = vpop.f32.mrf.mxu0
    %441 = vdwg.mxu0
    %v442 = vld [vmem:[#allocation6 + $0x40] sm:$0xff]
    %v443 = vld [vmem:[#allocation6 + $0x48] sm:$0xff]
    %v444 = vld [vmem:[#allocation6 + $0x50] sm:$0xff]
    %v445 = vld [vmem:[#allocation6 + $0x58] sm:$0xff]
    %446 = vmatprep.subr.mxu0 0.0
    %447 = vmatpush1.msra.mxu0 %v87
    %448 = vmatprep.subr.mxu0 0.0
    %449 = vmatpush1.msra.mxu0 %v86
    %450 = vmatprep.subr.mxu0 0.0
    %451 = vmatpush1.msra.mxu0 %v85
    %452 = vmatprep.subr.mxu0 0.0
    %453 = vmatpush1.msra.mxu0 %v84
    %454 = vmatprep.subr.mxu0 0.0
    %455 = vmatpush1.msra.mxu0 %v83
    %456 = vmatprep.subr.mxu0 0.0
    %457 = vmatpush1.msra.mxu0 %v82
    %458 = vmatprep.subr.mxu0 0.0
    %459 = vmatpush1.msra.mxu0 %v81
    %460 = vmatprep.subr.mxu0 0.0
    %461 = vmatpush1.msra.mxu0 %v80
    %462 = vmatprep.subr.mxu0 0.0
    %463 = vmatpush1.msra.mxu0 %v79
    %464 = vmatprep.subr.mxu0 0.0
    %465 = vmatpush1.msra.mxu0 %v78
    %466 = vmatprep.subr.mxu0 0.0
    %467 = vmatpush1.msra.mxu0 %v77
    %468 = vmatprep.subr.mxu0 0.0
    %469 = vmatpush1.msra.mxu0 %v76
    %470 = vmatprep.subr.mxu0 0.0
    %471 = vmatpush1.msra.mxu0 %v75
    %472 = vmatprep.subr.mxu0 0.0
    %473 = vmatpush1.msra.mxu0 %v74
    %474 = vmatprep.subr.mxu0 0.0
    %475 = vmatpush1.msra.mxu0 %v73
    %476 = vmatprep.subr.mxu0 0.0
    %477 = vmatpush1.msra.mxu0 %v72
    %478 = vmatprep.subr.mxu0 0.0
    %479 = vmatpush2.msra.mxu0 %v103
    %480 = vmatprep.subr.mxu0 0.0
    %481 = vmatpush2.msra.mxu0 %v102
    %482 = vmatprep.subr.mxu0 0.0
    %483 = vmatpush2.msra.mxu0 %v101
    %484 = vmatprep.subr.mxu0 0.0
    %485 = vmatpush2.msra.mxu0 %v100
    %486 = vmatprep.subr.mxu0 0.0
    %487 = vmatpush2.msra.mxu0 %v99
    %488 = vmatprep.subr.mxu0 0.0
    %489 = vmatpush2.msra.mxu0 %v98
    %490 = vmatprep.subr.mxu0 0.0
    %491 = vmatpush2.msra.mxu0 %v97
    %492 = vmatprep.subr.mxu0 0.0
    %493 = vmatpush2.msra.mxu0 %v96
    %494 = vmatprep.subr.mxu0 0.0
    %495 = vmatpush2.msra.mxu0 %v95
    %496 = vmatprep.subr.mxu0 0.0
    %497 = vmatpush2.msra.mxu0 %v94
    %498 = vmatprep.subr.mxu0 0.0
    %499 = vmatpush2.msra.mxu0 %v93
    %500 = vmatprep.subr.mxu0 0.0
    %501 = vmatpush2.msra.mxu0 %v92
    %502 = vmatprep.subr.mxu0 0.0
    %503 = vmatpush2.msra.mxu0 %v91
    %504 = vmatprep.subr.mxu0 0.0
    %505 = vmatpush2.msra.mxu0 %v90
    %506 = vmatprep.subr.mxu0 0.0
    %507 = vmatpush2.msra.mxu0 %v89
    %508 = vmatprep.subr.mxu0 0.0
    %509 = vmatpush2.msra.mxu0 %v88
    %510 = vmatprep.mubr.f32.mxu0 %v443
    %511 = vmatmul.mubr.f32.gmra.mxu0 %v442
    %v512 = vpop.f32.mrf.mxu0
    %v513 = vadd.f32 %v145, %v512
    %v514 = vpop.f32.mrf.mxu0
    %515 = vdwg.mxu0
    %516 = vmatprep.subr.mxu0 0.0
    %517 = vmatpush1.msra.mxu0 %v119
    %518 = vmatprep.subr.mxu0 0.0
    %519 = vmatpush1.msra.mxu0 %v118
    %520 = vmatprep.subr.mxu0 0.0
    %521 = vmatpush1.msra.mxu0 %v117
    %522 = vmatprep.subr.mxu0 0.0
    %523 = vmatpush1.msra.mxu0 %v116
    %524 = vmatprep.subr.mxu0 0.0
    %525 = vmatpush1.msra.mxu0 %v115
    %526 = vmatprep.subr.mxu0 0.0
    %527 = vmatpush1.msra.mxu0 %v114
    %528 = vmatprep.subr.mxu0 0.0
    %529 = vmatpush1.msra.mxu0 %v113
    %530 = vmatprep.subr.mxu0 0.0
    %531 = vmatpush1.msra.mxu0 %v112
    %532 = vmatprep.subr.mxu0 0.0
    %533 = vmatpush1.msra.mxu0 %v111
    %534 = vmatprep.subr.mxu0 0.0
    %535 = vmatpush1.msra.mxu0 %v110
    %536 = vmatprep.subr.mxu0 0.0
    %537 = vmatpush1.msra.mxu0 %v109
    %538 = vmatprep.subr.mxu0 0.0
    %539 = vmatpush1.msra.mxu0 %v108
    %540 = vmatprep.subr.mxu0 0.0
    %541 = vmatpush1.msra.mxu0 %v107
    %542 = vmatprep.subr.mxu0 0.0
    %543 = vmatpush1.msra.mxu0 %v106
    %544 = vmatprep.subr.mxu0 0.0
    %545 = vmatpush1.msra.mxu0 %v105
    %546 = vmatprep.subr.mxu0 0.0
    %547 = vmatpush1.msra.mxu0 %v104
    %548 = vmatprep.subr.mxu0 0.0
    %549 = vmatpush2.msra.mxu0 %v135
    %550 = vmatprep.subr.mxu0 0.0
    %551 = vmatpush2.msra.mxu0 %v134
    %552 = vmatprep.subr.mxu0 0.0
    %553 = vmatpush2.msra.mxu0 %v133
    %554 = vmatprep.subr.mxu0 0.0
    %555 = vmatpush2.msra.mxu0 %v132
    %556 = vmatprep.subr.mxu0 0.0
    %557 = vmatpush2.msra.mxu0 %v131
    %558 = vmatprep.subr.mxu0 0.0
    %559 = vmatpush2.msra.mxu0 %v130
    %560 = vmatprep.subr.mxu0 0.0
    %561 = vmatpush2.msra.mxu0 %v129
    %562 = vmatprep.subr.mxu0 0.0
    %563 = vmatpush2.msra.mxu0 %v128
    %564 = vmatprep.subr.mxu0 0.0
    %565 = vmatpush2.msra.mxu0 %v127
    %566 = vmatprep.subr.mxu0 0.0
    %567 = vmatpush2.msra.mxu0 %v126
    %568 = vmatprep.subr.mxu0 0.0
    %569 = vmatpush2.msra.mxu0 %v125
    %570 = vmatprep.subr.mxu0 0.0
    %571 = vmatpush2.msra.mxu0 %v124
    %572 = vmatprep.subr.mxu0 0.0
    %573 = vmatpush2.msra.mxu0 %v123
    %574 = vmatprep.subr.mxu0 0.0
    %575 = vmatpush2.msra.mxu0 %v122
    %576 = vmatprep.subr.mxu0 0.0
    %577 = vmatpush2.msra.mxu0 %v121
    %578 = vmatprep.subr.mxu0 0.0
    %579 = vmatpush2.msra.mxu0 %v120
    %580 = vmatprep.mubr.f32.mxu0 %v445
    %581 = vmatmul.mubr.f32.gmra.mxu0 %v444
    %v582 = vpop.f32.mrf.mxu0
    %v583 = vadd.f32 %v513, %v582
    %v584 = vpop.f32.mrf.mxu0
    %585 = vdwg.mxu0
    %v586 = vld [vmem:[#allocation6 + $0x60] sm:$0xff]
    %v587 = vld [vmem:[#allocation6 + $0x68] sm:$0xff]
    %v588 = vld [vmem:[#allocation6 + $0x70] sm:$0xff]
    %v589 = vld [vmem:[#allocation6 + $0x78] sm:$0xff]
    %590 = vmatprep.subr.mxu0 0.0
    %591 = vmatpush1.msra.mxu0 %v87
    %592 = vmatprep.subr.mxu0 0.0
    %593 = vmatpush1.msra.mxu0 %v86
    %594 = vmatprep.subr.mxu0 0.0
    %595 = vmatpush1.msra.mxu0 %v85
    %596 = vmatprep.subr.mxu0 0.0
    %597 = vmatpush1.msra.mxu0 %v84
    %598 = vmatprep.subr.mxu0 0.0
    %599 = vmatpush1.msra.mxu0 %v83
    %600 = vmatprep.subr.mxu0 0.0
    %601 = vmatpush1.msra.mxu0 %v82
    %602 = vmatprep.subr.mxu0 0.0
    %603 = vmatpush1.msra.mxu0 %v81
    %604 = vmatprep.subr.mxu0 0.0
    %605 = vmatpush1.msra.mxu0 %v80
    %606 = vmatprep.subr.mxu0 0.0
    %607 = vmatpush1.msra.mxu0 %v79
    %608 = vmatprep.subr.mxu0 0.0
    %609 = vmatpush1.msra.mxu0 %v78
    %610 = vmatprep.subr.mxu0 0.0
    %611 = vmatpush1.msra.mxu0 %v77
    %612 = vmatprep.subr.mxu0 0.0
    %613 = vmatpush1.msra.mxu0 %v76
    %614 = vmatprep.subr.mxu0 0.0
    %615 = vmatpush1.msra.mxu0 %v75
    %616 = vmatprep.subr.mxu0 0.0
    %617 = vmatpush1.msra.mxu0 %v74
    %618 = vmatprep.subr.mxu0 0.0
    %619 = vmatpush1.msra.mxu0 %v73
    %620 = vmatprep.subr.mxu0 0.0
    %621 = vmatpush1.msra.mxu0 %v72
    %622 = vmatprep.subr.mxu0 0.0
    %623 = vmatpush2.msra.mxu0 %v103
    %624 = vmatprep.subr.mxu0 0.0
    %625 = vmatpush2.msra.mxu0 %v102
    %626 = vmatprep.subr.mxu0 0.0
    %627 = vmatpush2.msra.mxu0 %v101
    %628 = vmatprep.subr.mxu0 0.0
    %629 = vmatpush2.msra.mxu0 %v100
    %630 = vmatprep.subr.mxu0 0.0
    %631 = vmatpush2.msra.mxu0 %v99
    %632 = vmatprep.subr.mxu0 0.0
    %633 = vmatpush2.msra.mxu0 %v98
    %634 = vmatprep.subr.mxu0 0.0
    %635 = vmatpush2.msra.mxu0 %v97
    %636 = vmatprep.subr.mxu0 0.0
    %637 = vmatpush2.msra.mxu0 %v96
    %638 = vmatprep.subr.mxu0 0.0
    %639 = vmatpush2.msra.mxu0 %v95
    %640 = vmatprep.subr.mxu0 0.0
    %641 = vmatpush2.msra.mxu0 %v94
    %642 = vmatprep.subr.mxu0 0.0
    %643 = vmatpush2.msra.mxu0 %v93
    %644 = vmatprep.subr.mxu0 0.0
    %645 = vmatpush2.msra.mxu0 %v92
    %646 = vmatprep.subr.mxu0 0.0
    %647 = vmatpush2.msra.mxu0 %v91
    %648 = vmatprep.subr.mxu0 0.0
    %649 = vmatpush2.msra.mxu0 %v90
    %650 = vmatprep.subr.mxu0 0.0
    %651 = vmatpush2.msra.mxu0 %v89
    %652 = vmatprep.subr.mxu0 0.0
    %653 = vmatpush2.msra.mxu0 %v88
    %654 = vmatprep.mubr.f32.mxu0 %v587
    %655 = vmatmul.mubr.f32.gmra.mxu0 %v586
    %v656 = vpop.f32.mrf.mxu0
    %v657 = vadd.f32 %v145, %v656
    %v658 = vpop.f32.mrf.mxu0
    %659 = vdwg.mxu0
    %660 = vmatprep.subr.mxu0 0.0
    %661 = vmatpush1.msra.mxu0 %v119
    %662 = vmatprep.subr.mxu0 0.0
    %663 = vmatpush1.msra.mxu0 %v118
    %664 = vmatprep.subr.mxu0 0.0
    %665 = vmatpush1.msra.mxu0 %v117
    %666 = vmatprep.subr.mxu0 0.0
    %667 = vmatpush1.msra.mxu0 %v116
    %668 = vmatprep.subr.mxu0 0.0
    %669 = vmatpush1.msra.mxu0 %v115
    %670 = vmatprep.subr.mxu0 0.0
    %671 = vmatpush1.msra.mxu0 %v114
    %672 = vmatprep.subr.mxu0 0.0
    %673 = vmatpush1.msra.mxu0 %v113
    %674 = vmatprep.subr.mxu0 0.0
    %675 = vmatpush1.msra.mxu0 %v112
    %676 = vmatprep.subr.mxu0 0.0
    %677 = vmatpush1.msra.mxu0 %v111
    %678 = vmatprep.subr.mxu0 0.0
    %679 = vmatpush1.msra.mxu0 %v110
    %680 = vmatprep.subr.mxu0 0.0
    %681 = vmatpush1.msra.mxu0 %v109
    %682 = vmatprep.subr.mxu0 0.0
    %683 = vmatpush1.msra.mxu0 %v108
    %684 = vmatprep.subr.mxu0 0.0
    %685 = vmatpush1.msra.mxu0 %v107
    %686 = vmatprep.subr.mxu0 0.0
    %687 = vmatpush1.msra.mxu0 %v106
    %688 = vmatprep.subr.mxu0 0.0
    %689 = vmatpush1.msra.mxu0 %v105
    %690 = vmatprep.subr.mxu0 0.0
    %691 = vmatpush1.msra.mxu0 %v104
    %692 = vmatprep.subr.mxu0 0.0
    %693 = vmatpush2.msra.mxu0 %v135
    %694 = vmatprep.subr.mxu0 0.0
    %695 = vmatpush2.msra.mxu0 %v134
    %696 = vmatprep.subr.mxu0 0.0
    %697 = vmatpush2.msra.mxu0 %v133
    %698 = vmatprep.subr.mxu0 0.0
    %699 = vmatpush2.msra.mxu0 %v132
    %700 = vmatprep.subr.mxu0 0.0
    %701 = vmatpush2.msra.mxu0 %v131
    %702 = vmatprep.subr.mxu0 0.0
    %703 = vmatpush2.msra.mxu0 %v130
    %704 = vmatprep.subr.mxu0 0.0
    %705 = vmatpush2.msra.mxu0 %v129
    %706 = vmatprep.subr.mxu0 0.0
    %707 = vmatpush2.msra.mxu0 %v128
    %708 = vmatprep.subr.mxu0 0.0
    %709 = vmatpush2.msra.mxu0 %v127
    %710 = vmatprep.subr.mxu0 0.0
    %711 = vmatpush2.msra.mxu0 %v126
    %712 = vmatprep.subr.mxu0 0.0
    %713 = vmatpush2.msra.mxu0 %v125
    %714 = vmatprep.subr.mxu0 0.0
    %715 = vmatpush2.msra.mxu0 %v124
    %716 = vmatprep.subr.mxu0 0.0
    %717 = vmatpush2.msra.mxu0 %v123
    %718 = vmatprep.subr.mxu0 0.0
    %719 = vmatpush2.msra.mxu0 %v122
    %720 = vmatprep.subr.mxu0 0.0
    %721 = vmatpush2.msra.mxu0 %v121
    %722 = vmatprep.subr.mxu0 0.0
    %723 = vmatpush2.msra.mxu0 %v120
    %724 = vmatprep.mubr.f32.mxu0 %v589
    %725 = vmatmul.mubr.f32.gmra.mxu0 %v588
    %v726 = vpop.f32.mrf.mxu0
    %v727 = vadd.f32 %v657, %v726
    %v728 = vpop.f32.mrf.mxu0
    %729 = vdwg.mxu0
    %v730 = vld [vmem:[#allocation6 + $0x80] sm:$0xff]
    %v731 = vld [vmem:[#allocation6 + $0x88] sm:$0xff]
    %v732 = vld [vmem:[#allocation6 + $0x90] sm:$0xff]
    %v733 = vld [vmem:[#allocation6 + $0x98] sm:$0xff]
    %734 = vmatprep.subr.mxu0 0.0
    %735 = vmatpush1.msra.mxu0 %v87
    %736 = vmatprep.subr.mxu0 0.0
    %737 = vmatpush1.msra.mxu0 %v86
    %738 = vmatprep.subr.mxu0 0.0
    %739 = vmatpush1.msra.mxu0 %v85
    %740 = vmatprep.subr.mxu0 0.0
    %741 = vmatpush1.msra.mxu0 %v84
    %742 = vmatprep.subr.mxu0 0.0
    %743 = vmatpush1.msra.mxu0 %v83
    %744 = vmatprep.subr.mxu0 0.0
    %745 = vmatpush1.msra.mxu0 %v82
    %746 = vmatprep.subr.mxu0 0.0
    %747 = vmatpush1.msra.mxu0 %v81
    %748 = vmatprep.subr.mxu0 0.0
    %749 = vmatpush1.msra.mxu0 %v80
    %750 = vmatprep.subr.mxu0 0.0
    %751 = vmatpush1.msra.mxu0 %v79
    %752 = vmatprep.subr.mxu0 0.0
    %753 = vmatpush1.msra.mxu0 %v78
    %754 = vmatprep.subr.mxu0 0.0
    %755 = vmatpush1.msra.mxu0 %v77
    %756 = vmatprep.subr.mxu0 0.0
    %757 = vmatpush1.msra.mxu0 %v76
    %758 = vmatprep.subr.mxu0 0.0
    %759 = vmatpush1.msra.mxu0 %v75
    %760 = vmatprep.subr.mxu0 0.0
    %761 = vmatpush1.msra.mxu0 %v74
    %762 = vmatprep.subr.mxu0 0.0
    %763 = vmatpush1.msra.mxu0 %v73
    %764 = vmatprep.subr.mxu0 0.0
    %765 = vmatpush1.msra.mxu0 %v72
    %766 = vmatprep.subr.mxu0 0.0
    %767 = vmatpush2.msra.mxu0 %v103
    %768 = vmatprep.subr.mxu0 0.0
    %769 = vmatpush2.msra.mxu0 %v102
    %770 = vmatprep.subr.mxu0 0.0
    %771 = vmatpush2.msra.mxu0 %v101
    %772 = vmatprep.subr.mxu0 0.0
    %773 = vmatpush2.msra.mxu0 %v100
    %774 = vmatprep.subr.mxu0 0.0
    %775 = vmatpush2.msra.mxu0 %v99
    %776 = vmatprep.subr.mxu0 0.0
    %777 = vmatpush2.msra.mxu0 %v98
    %778 = vmatprep.subr.mxu0 0.0
    %779 = vmatpush2.msra.mxu0 %v97
    %780 = vmatprep.subr.mxu0 0.0
    %781 = vmatpush2.msra.mxu0 %v96
    %782 = vmatprep.subr.mxu0 0.0
    %783 = vmatpush2.msra.mxu0 %v95
    %784 = vmatprep.subr.mxu0 0.0
    %785 = vmatpush2.msra.mxu0 %v94
    %786 = vmatprep.subr.mxu0 0.0
    %787 = vmatpush2.msra.mxu0 %v93
    %788 = vmatprep.subr.mxu0 0.0
    %789 = vmatpush2.msra.mxu0 %v92
    %790 = vmatprep.subr.mxu0 0.0
    %791 = vmatpush2.msra.mxu0 %v91
    %792 = vmatprep.subr.mxu0 0.0
    %793 = vmatpush2.msra.mxu0 %v90
    %794 = vmatprep.subr.mxu0 0.0
    %795 = vmatpush2.msra.mxu0 %v89
    %796 = vmatprep.subr.mxu0 0.0
    %797 = vmatpush2.msra.mxu0 %v88
    %798 = vmatprep.mubr.f32.mxu0 %v731
    %799 = vmatmul.mubr.f32.gmra.mxu0 %v730
    %v800 = vpop.f32.mrf.mxu0
    %v801 = vadd.f32 %v145, %v800
    %v802 = vpop.f32.mrf.mxu0
    %803 = vdwg.mxu0
    %804 = vmatprep.subr.mxu0 0.0
    %805 = vmatpush1.msra.mxu0 %v119
    %806 = vmatprep.subr.mxu0 0.0
    %807 = vmatpush1.msra.mxu0 %v118
    %808 = vmatprep.subr.mxu0 0.0
    %809 = vmatpush1.msra.mxu0 %v117
    %810 = vmatprep.subr.mxu0 0.0
    %811 = vmatpush1.msra.mxu0 %v116
    %812 = vmatprep.subr.mxu0 0.0
    %813 = vmatpush1.msra.mxu0 %v115
    %814 = vmatprep.subr.mxu0 0.0
    %815 = vmatpush1.msra.mxu0 %v114
    %816 = vmatprep.subr.mxu0 0.0
    %817 = vmatpush1.msra.mxu0 %v113
    %818 = vmatprep.subr.mxu0 0.0
    %819 = vmatpush1.msra.mxu0 %v112
    %820 = vmatprep.subr.mxu0 0.0
    %821 = vmatpush1.msra.mxu0 %v111
    %822 = vmatprep.subr.mxu0 0.0
    %823 = vmatpush1.msra.mxu0 %v110
    %824 = vmatprep.subr.mxu0 0.0
    %825 = vmatpush1.msra.mxu0 %v109
    %826 = vmatprep.subr.mxu0 0.0
    %827 = vmatpush1.msra.mxu0 %v108
    %828 = vmatprep.subr.mxu0 0.0
    %829 = vmatpush1.msra.mxu0 %v107
    %830 = vmatprep.subr.mxu0 0.0
    %831 = vmatpush1.msra.mxu0 %v106
    %832 = vmatprep.subr.mxu0 0.0
    %833 = vmatpush1.msra.mxu0 %v105
    %834 = vmatprep.subr.mxu0 0.0
    %835 = vmatpush1.msra.mxu0 %v104
    %836 = vmatprep.subr.mxu0 0.0
    %837 = vmatpush2.msra.mxu0 %v135
    %838 = vmatprep.subr.mxu0 0.0
    %839 = vmatpush2.msra.mxu0 %v134
    %840 = vmatprep.subr.mxu0 0.0
    %841 = vmatpush2.msra.mxu0 %v133
    %842 = vmatprep.subr.mxu0 0.0
    %843 = vmatpush2.msra.mxu0 %v132
    %844 = vmatprep.subr.mxu0 0.0
    %845 = vmatpush2.msra.mxu0 %v131
    %846 = vmatprep.subr.mxu0 0.0
    %847 = vmatpush2.msra.mxu0 %v130
    %848 = vmatprep.subr.mxu0 0.0
    %849 = vmatpush2.msra.mxu0 %v129
    %850 = vmatprep.subr.mxu0 0.0
    %851 = vmatpush2.msra.mxu0 %v128
    %852 = vmatprep.subr.mxu0 0.0
    %853 = vmatpush2.msra.mxu0 %v127
    %854 = vmatprep.subr.mxu0 0.0
    %855 = vmatpush2.msra.mxu0 %v126
    %856 = vmatprep.subr.mxu0 0.0
    %857 = vmatpush2.msra.mxu0 %v125
    %858 = vmatprep.subr.mxu0 0.0
    %859 = vmatpush2.msra.mxu0 %v124
    %860 = vmatprep.subr.mxu0 0.0
    %861 = vmatpush2.msra.mxu0 %v123
    %862 = vmatprep.subr.mxu0 0.0
    %863 = vmatpush2.msra.mxu0 %v122
    %864 = vmatprep.subr.mxu0 0.0
    %865 = vmatpush2.msra.mxu0 %v121
    %866 = vmatprep.subr.mxu0 0.0
    %867 = vmatpush2.msra.mxu0 %v120
    %868 = vmatprep.mubr.f32.mxu0 %v733
    %869 = vmatmul.mubr.f32.gmra.mxu0 %v732
    %v870 = vpop.f32.mrf.mxu0
    %v871 = vadd.f32 %v801, %v870
    %v872 = vpop.f32.mrf.mxu0
    %873 = vdwg.mxu0
    %v874 = vld [vmem:[#allocation6 + $0xa0] sm:$0xff]
    %v875 = vld [vmem:[#allocation6 + $0xa8] sm:$0xff]
    %v876 = vld [vmem:[#allocation6 + $0xb0] sm:$0xff]
    %v877 = vld [vmem:[#allocation6 + $0xb8] sm:$0xff]
    %878 = vmatprep.subr.mxu0 0.0
    %879 = vmatpush1.msra.mxu0 %v87
    %880 = vmatprep.subr.mxu0 0.0
    %881 = vmatpush1.msra.mxu0 %v86
    %882 = vmatprep.subr.mxu0 0.0
    %883 = vmatpush1.msra.mxu0 %v85
    %884 = vmatprep.subr.mxu0 0.0
    %885 = vmatpush1.msra.mxu0 %v84
    %886 = vmatprep.subr.mxu0 0.0
    %887 = vmatpush1.msra.mxu0 %v83
    %888 = vmatprep.subr.mxu0 0.0
    %889 = vmatpush1.msra.mxu0 %v82
    %890 = vmatprep.subr.mxu0 0.0
    %891 = vmatpush1.msra.mxu0 %v81
    %892 = vmatprep.subr.mxu0 0.0
    %893 = vmatpush1.msra.mxu0 %v80
    %894 = vmatprep.subr.mxu0 0.0
    %895 = vmatpush1.msra.mxu0 %v79
    %896 = vmatprep.subr.mxu0 0.0
    %897 = vmatpush1.msra.mxu0 %v78
    %898 = vmatprep.subr.mxu0 0.0
    %899 = vmatpush1.msra.mxu0 %v77
    %900 = vmatprep.subr.mxu0 0.0
    %901 = vmatpush1.msra.mxu0 %v76
    %902 = vmatprep.subr.mxu0 0.0
    %903 = vmatpush1.msra.mxu0 %v75
    %904 = vmatprep.subr.mxu0 0.0
    %905 = vmatpush1.msra.mxu0 %v74
    %906 = vmatprep.subr.mxu0 0.0
    %907 = vmatpush1.msra.mxu0 %v73
    %908 = vmatprep.subr.mxu0 0.0
    %909 = vmatpush1.msra.mxu0 %v72
    %910 = vmatprep.subr.mxu0 0.0
    %911 = vmatpush2.msra.mxu0 %v103
    %912 = vmatprep.subr.mxu0 0.0
    %913 = vmatpush2.msra.mxu0 %v102
    %914 = vmatprep.subr.mxu0 0.0
    %915 = vmatpush2.msra.mxu0 %v101
    %916 = vmatprep.subr.mxu0 0.0
    %917 = vmatpush2.msra.mxu0 %v100
    %918 = vmatprep.subr.mxu0 0.0
    %919 = vmatpush2.msra.mxu0 %v99
    %920 = vmatprep.subr.mxu0 0.0
    %921 = vmatpush2.msra.mxu0 %v98
    %922 = vmatprep.subr.mxu0 0.0
    %923 = vmatpush2.msra.mxu0 %v97
    %924 = vmatprep.subr.mxu0 0.0
    %925 = vmatpush2.msra.mxu0 %v96
    %926 = vmatprep.subr.mxu0 0.0
    %927 = vmatpush2.msra.mxu0 %v95
    %928 = vmatprep.subr.mxu0 0.0
    %929 = vmatpush2.msra.mxu0 %v94
    %930 = vmatprep.subr.mxu0 0.0
    %931 = vmatpush2.msra.mxu0 %v93
    %932 = vmatprep.subr.mxu0 0.0
    %933 = vmatpush2.msra.mxu0 %v92
    %934 = vmatprep.subr.mxu0 0.0
    %935 = vmatpush2.msra.mxu0 %v91
    %936 = vmatprep.subr.mxu0 0.0
    %937 = vmatpush2.msra.mxu0 %v90
    %938 = vmatprep.subr.mxu0 0.0
    %939 = vmatpush2.msra.mxu0 %v89
    %940 = vmatprep.subr.mxu0 0.0
    %941 = vmatpush2.msra.mxu0 %v88
    %942 = vmatprep.mubr.f32.mxu0 %v875
    %943 = vmatmul.mubr.f32.gmra.mxu0 %v874
    %v944 = vpop.f32.mrf.mxu0
    %v945 = vadd.f32 %v145, %v944
    %v946 = vpop.f32.mrf.mxu0
    %947 = vdwg.mxu0
    %948 = vmatprep.subr.mxu0 0.0
    %949 = vmatpush1.msra.mxu0 %v119
    %950 = vmatprep.subr.mxu0 0.0
    %951 = vmatpush1.msra.mxu0 %v118
    %952 = vmatprep.subr.mxu0 0.0
    %953 = vmatpush1.msra.mxu0 %v117
    %954 = vmatprep.subr.mxu0 0.0
    %955 = vmatpush1.msra.mxu0 %v116
    %956 = vmatprep.subr.mxu0 0.0
    %957 = vmatpush1.msra.mxu0 %v115
    %958 = vmatprep.subr.mxu0 0.0
    %959 = vmatpush1.msra.mxu0 %v114
    %960 = vmatprep.subr.mxu0 0.0
    %961 = vmatpush1.msra.mxu0 %v113
    %962 = vmatprep.subr.mxu0 0.0
    %963 = vmatpush1.msra.mxu0 %v112
    %964 = vmatprep.subr.mxu0 0.0
    %965 = vmatpush1.msra.mxu0 %v111
    %966 = vmatprep.subr.mxu0 0.0
    %967 = vmatpush1.msra.mxu0 %v110
    %968 = vmatprep.subr.mxu0 0.0
    %969 = vmatpush1.msra.mxu0 %v109
    %970 = vmatprep.subr.mxu0 0.0
    %971 = vmatpush1.msra.mxu0 %v108
    %972 = vmatprep.subr.mxu0 0.0
    %973 = vmatpush1.msra.mxu0 %v107
    %974 = vmatprep.subr.mxu0 0.0
    %975 = vmatpush1.msra.mxu0 %v106
    %976 = vmatprep.subr.mxu0 0.0
    %977 = vmatpush1.msra.mxu0 %v105
    %978 = vmatprep.subr.mxu0 0.0
    %979 = vmatpush1.msra.mxu0 %v104
    %980 = vmatprep.subr.mxu0 0.0
    %981 = vmatpush2.msra.mxu0 %v135
    %982 = vmatprep.subr.mxu0 0.0
    %983 = vmatpush2.msra.mxu0 %v134
    %984 = vmatprep.subr.mxu0 0.0
    %985 = vmatpush2.msra.mxu0 %v133
    %986 = vmatprep.subr.mxu0 0.0
    %987 = vmatpush2.msra.mxu0 %v132
    %988 = vmatprep.subr.mxu0 0.0
    %989 = vmatpush2.msra.mxu0 %v131
    %990 = vmatprep.subr.mxu0 0.0
    %991 = vmatpush2.msra.mxu0 %v130
    %992 = vmatprep.subr.mxu0 0.0
    %993 = vmatpush2.msra.mxu0 %v129
    %994 = vmatprep.subr.mxu0 0.0
    %995 = vmatpush2.msra.mxu0 %v128
    %996 = vmatprep.subr.mxu0 0.0
    %997 = vmatpush2.msra.mxu0 %v127
    %998 = vmatprep.subr.mxu0 0.0
    %999 = vmatpush2.msra.mxu0 %v126
    %1000 = vmatprep.subr.mxu0 0.0
    %1001 = vmatpush2.msra.mxu0 %v125
    %1002 = vmatprep.subr.mxu0 0.0
    %1003 = vmatpush2.msra.mxu0 %v124
    %1004 = vmatprep.subr.mxu0 0.0
    %1005 = vmatpush2.msra.mxu0 %v123
    %1006 = vmatprep.subr.mxu0 0.0
    %1007 = vmatpush2.msra.mxu0 %v122
    %1008 = vmatprep.subr.mxu0 0.0
    %1009 = vmatpush2.msra.mxu0 %v121
    %1010 = vmatprep.subr.mxu0 0.0
    %1011 = vmatpush2.msra.mxu0 %v120
    %1012 = vmatprep.mubr.f32.mxu0 %v877
    %1013 = vmatmul.mubr.f32.gmra.mxu0 %v876
    %v1014 = vpop.f32.mrf.mxu0
    %v1015 = vadd.f32 %v945, %v1014
    %v1016 = vpop.f32.mrf.mxu0
    %1017 = vdwg.mxu0
    %v1018 = vld [vmem:[#allocation6 + $0xc0] sm:$0xff]
    %v1019 = vld [vmem:[#allocation6 + $0xc8] sm:$0xff]
    %v1020 = vld [vmem:[#allocation6 + $0xd0] sm:$0xff]
    %v1021 = vld [vmem:[#allocation6 + $0xd8] sm:$0xff]
    %1022 = vmatprep.subr.mxu0 0.0
    %1023 = vmatpush1.msra.mxu0 %v87
    %1024 = vmatprep.subr.mxu0 0.0
    %1025 = vmatpush1.msra.mxu0 %v86
    %1026 = vmatprep.subr.mxu0 0.0
    %1027 = vmatpush1.msra.mxu0 %v85
    %1028 = vmatprep.subr.mxu0 0.0
    %1029 = vmatpush1.msra.mxu0 %v84
    %1030 = vmatprep.subr.mxu0 0.0
    %1031 = vmatpush1.msra.mxu0 %v83
    %1032 = vmatprep.subr.mxu0 0.0
    %1033 = vmatpush1.msra.mxu0 %v82
    %1034 = vmatprep.subr.mxu0 0.0
    %1035 = vmatpush1.msra.mxu0 %v81
    %1036 = vmatprep.subr.mxu0 0.0
    %1037 = vmatpush1.msra.mxu0 %v80
    %1038 = vmatprep.subr.mxu0 0.0
    %1039 = vmatpush1.msra.mxu0 %v79
    %1040 = vmatprep.subr.mxu0 0.0
    %1041 = vmatpush1.msra.mxu0 %v78
    %1042 = vmatprep.subr.mxu0 0.0
    %1043 = vmatpush1.msra.mxu0 %v77
    %1044 = vmatprep.subr.mxu0 0.0
    %1045 = vmatpush1.msra.mxu0 %v76
    %1046 = vmatprep.subr.mxu0 0.0
    %1047 = vmatpush1.msra.mxu0 %v75
    %1048 = vmatprep.subr.mxu0 0.0
    %1049 = vmatpush1.msra.mxu0 %v74
    %1050 = vmatprep.subr.mxu0 0.0
    %1051 = vmatpush1.msra.mxu0 %v73
    %1052 = vmatprep.subr.mxu0 0.0
    %1053 = vmatpush1.msra.mxu0 %v72
    %1054 = vmatprep.subr.mxu0 0.0
    %1055 = vmatpush2.msra.mxu0 %v103
    %1056 = vmatprep.subr.mxu0 0.0
    %1057 = vmatpush2.msra.mxu0 %v102
    %1058 = vmatprep.subr.mxu0 0.0
    %1059 = vmatpush2.msra.mxu0 %v101
    %1060 = vmatprep.subr.mxu0 0.0
    %1061 = vmatpush2.msra.mxu0 %v100
    %1062 = vmatprep.subr.mxu0 0.0
    %1063 = vmatpush2.msra.mxu0 %v99
    %1064 = vmatprep.subr.mxu0 0.0
    %1065 = vmatpush2.msra.mxu0 %v98
    %1066 = vmatprep.subr.mxu0 0.0
    %1067 = vmatpush2.msra.mxu0 %v97
    %1068 = vmatprep.subr.mxu0 0.0
    %1069 = vmatpush2.msra.mxu0 %v96
    %1070 = vmatprep.subr.mxu0 0.0
    %1071 = vmatpush2.msra.mxu0 %v95
    %1072 = vmatprep.subr.mxu0 0.0
    %1073 = vmatpush2.msra.mxu0 %v94
    %1074 = vmatprep.subr.mxu0 0.0
    %1075 = vmatpush2.msra.mxu0 %v93
    %1076 = vmatprep.subr.mxu0 0.0
    %1077 = vmatpush2.msra.mxu0 %v92
    %1078 = vmatprep.subr.mxu0 0.0
    %1079 = vmatpush2.msra.mxu0 %v91
    %1080 = vmatprep.subr.mxu0 0.0
    %1081 = vmatpush2.msra.mxu0 %v90
    %1082 = vmatprep.subr.mxu0 0.0
    %1083 = vmatpush2.msra.mxu0 %v89
    %1084 = vmatprep.subr.mxu0 0.0
    %1085 = vmatpush2.msra.mxu0 %v88
    %1086 = vmatprep.mubr.f32.mxu0 %v1019
    %1087 = vmatmul.mubr.f32.gmra.mxu0 %v1018
    %v1088 = vpop.f32.mrf.mxu0
    %v1089 = vadd.f32 %v145, %v1088
    %v1090 = vpop.f32.mrf.mxu0
    %1091 = vdwg.mxu0
    %1092 = vmatprep.subr.mxu0 0.0
    %1093 = vmatpush1.msra.mxu0 %v119
    %1094 = vmatprep.subr.mxu0 0.0
    %1095 = vmatpush1.msra.mxu0 %v118
    %1096 = vmatprep.subr.mxu0 0.0
    %1097 = vmatpush1.msra.mxu0 %v117
    %1098 = vmatprep.subr.mxu0 0.0
    %1099 = vmatpush1.msra.mxu0 %v116
    %1100 = vmatprep.subr.mxu0 0.0
    %1101 = vmatpush1.msra.mxu0 %v115
    %1102 = vmatprep.subr.mxu0 0.0
    %1103 = vmatpush1.msra.mxu0 %v114
    %1104 = vmatprep.subr.mxu0 0.0
    %1105 = vmatpush1.msra.mxu0 %v113
    %1106 = vmatprep.subr.mxu0 0.0
    %1107 = vmatpush1.msra.mxu0 %v112
    %1108 = vmatprep.subr.mxu0 0.0
    %1109 = vmatpush1.msra.mxu0 %v111
    %1110 = vmatprep.subr.mxu0 0.0
    %1111 = vmatpush1.msra.mxu0 %v110
    %1112 = vmatprep.subr.mxu0 0.0
    %1113 = vmatpush1.msra.mxu0 %v109
    %1114 = vmatprep.subr.mxu0 0.0
    %1115 = vmatpush1.msra.mxu0 %v108
    %1116 = vmatprep.subr.mxu0 0.0
    %1117 = vmatpush1.msra.mxu0 %v107
    %1118 = vmatprep.subr.mxu0 0.0
    %1119 = vmatpush1.msra.mxu0 %v106
    %1120 = vmatprep.subr.mxu0 0.0
    %1121 = vmatpush1.msra.mxu0 %v105
    %1122 = vmatprep.subr.mxu0 0.0
    %1123 = vmatpush1.msra.mxu0 %v104
    %1124 = vmatprep.subr.mxu0 0.0
    %1125 = vmatpush2.msra.mxu0 %v135
    %1126 = vmatprep.subr.mxu0 0.0
    %1127 = vmatpush2.msra.mxu0 %v134
    %1128 = vmatprep.subr.mxu0 0.0
    %1129 = vmatpush2.msra.mxu0 %v133
    %1130 = vmatprep.subr.mxu0 0.0
    %1131 = vmatpush2.msra.mxu0 %v132
    %1132 = vmatprep.subr.mxu0 0.0
    %1133 = vmatpush2.msra.mxu0 %v131
    %1134 = vmatprep.subr.mxu0 0.0
    %1135 = vmatpush2.msra.mxu0 %v130
    %1136 = vmatprep.subr.mxu0 0.0
    %1137 = vmatpush2.msra.mxu0 %v129
    %1138 = vmatprep.subr.mxu0 0.0
    %1139 = vmatpush2.msra.mxu0 %v128
    %1140 = vmatprep.subr.mxu0 0.0
    %1141 = vmatpush2.msra.mxu0 %v127
    %1142 = vmatprep.subr.mxu0 0.0
    %1143 = vmatpush2.msra.mxu0 %v126
    %1144 = vmatprep.subr.mxu0 0.0
    %1145 = vmatpush2.msra.mxu0 %v125
    %1146 = vmatprep.subr.mxu0 0.0
    %1147 = vmatpush2.msra.mxu0 %v124
    %1148 = vmatprep.subr.mxu0 0.0
    %1149 = vmatpush2.msra.mxu0 %v123
    %1150 = vmatprep.subr.mxu0 0.0
    %1151 = vmatpush2.msra.mxu0 %v122
    %1152 = vmatprep.subr.mxu0 0.0
    %1153 = vmatpush2.msra.mxu0 %v121
    %1154 = vmatprep.subr.mxu0 0.0
    %1155 = vmatpush2.msra.mxu0 %v120
    %1156 = vmatprep.mubr.f32.mxu0 %v1021
    %1157 = vmatmul.mubr.f32.gmra.mxu0 %v1020
    %v1158 = vpop.f32.mrf.mxu0
    %v1159 = vadd.f32 %v1089, %v1158
    %v1160 = vpop.f32.mrf.mxu0
    %1161 = vdwg.mxu0
    %v1162 = vld [vmem:[#allocation6 + $0xe0] sm:$0xff]
    %v1163 = vld [vmem:[#allocation6 + $0xe8] sm:$0xff]
    %v1164 = vld [vmem:[#allocation6 + $0xf0] sm:$0xff]
    %v1165 = vld [vmem:[#allocation6 + $0xf8] sm:$0xff]
    %1166 = vmatprep.subr.mxu0 0.0
    %1167 = vmatpush1.msra.mxu0 %v87
    %1168 = vmatprep.subr.mxu0 0.0
    %1169 = vmatpush1.msra.mxu0 %v86
    %1170 = vmatprep.subr.mxu0 0.0
    %1171 = vmatpush1.msra.mxu0 %v85
    %1172 = vmatprep.subr.mxu0 0.0
    %1173 = vmatpush1.msra.mxu0 %v84
    %1174 = vmatprep.subr.mxu0 0.0
    %1175 = vmatpush1.msra.mxu0 %v83
    %1176 = vmatprep.subr.mxu0 0.0
    %1177 = vmatpush1.msra.mxu0 %v82
    %1178 = vmatprep.subr.mxu0 0.0
    %1179 = vmatpush1.msra.mxu0 %v81
    %1180 = vmatprep.subr.mxu0 0.0
    %1181 = vmatpush1.msra.mxu0 %v80
    %1182 = vmatprep.subr.mxu0 0.0
    %1183 = vmatpush1.msra.mxu0 %v79
    %1184 = vmatprep.subr.mxu0 0.0
    %1185 = vmatpush1.msra.mxu0 %v78
    %1186 = vmatprep.subr.mxu0 0.0
    %1187 = vmatpush1.msra.mxu0 %v77
    %1188 = vmatprep.subr.mxu0 0.0
    %1189 = vmatpush1.msra.mxu0 %v76
    %1190 = vmatprep.subr.mxu0 0.0
    %1191 = vmatpush1.msra.mxu0 %v75
    %1192 = vmatprep.subr.mxu0 0.0
    %1193 = vmatpush1.msra.mxu0 %v74
    %1194 = vmatprep.subr.mxu0 0.0
    %1195 = vmatpush1.msra.mxu0 %v73
    %1196 = vmatprep.subr.mxu0 0.0
    %1197 = vmatpush1.msra.mxu0 %v72
    %1198 = vmatprep.subr.mxu0 0.0
    %1199 = vmatpush2.msra.mxu0 %v103
    %1200 = vmatprep.subr.mxu0 0.0
    %1201 = vmatpush2.msra.mxu0 %v102
    %1202 = vmatprep.subr.mxu0 0.0
    %1203 = vmatpush2.msra.mxu0 %v101
    %1204 = vmatprep.subr.mxu0 0.0
    %1205 = vmatpush2.msra.mxu0 %v100
    %1206 = vmatprep.subr.mxu0 0.0
    %1207 = vmatpush2.msra.mxu0 %v99
    %1208 = vmatprep.subr.mxu0 0.0
    %1209 = vmatpush2.msra.mxu0 %v98
    %1210 = vmatprep.subr.mxu0 0.0
    %1211 = vmatpush2.msra.mxu0 %v97
    %1212 = vmatprep.subr.mxu0 0.0
    %1213 = vmatpush2.msra.mxu0 %v96
    %1214 = vmatprep.subr.mxu0 0.0
    %1215 = vmatpush2.msra.mxu0 %v95
    %1216 = vmatprep.subr.mxu0 0.0
    %1217 = vmatpush2.msra.mxu0 %v94
    %1218 = vmatprep.subr.mxu0 0.0
    %1219 = vmatpush2.msra.mxu0 %v93
    %1220 = vmatprep.subr.mxu0 0.0
    %1221 = vmatpush2.msra.mxu0 %v92
    %1222 = vmatprep.subr.mxu0 0.0
    %1223 = vmatpush2.msra.mxu0 %v91
    %1224 = vmatprep.subr.mxu0 0.0
    %1225 = vmatpush2.msra.mxu0 %v90
    %1226 = vmatprep.subr.mxu0 0.0
    %1227 = vmatpush2.msra.mxu0 %v89
    %1228 = vmatprep.subr.mxu0 0.0
    %1229 = vmatpush2.msra.mxu0 %v88
    %1230 = vmatprep.mubr.f32.mxu0 %v1163
    %1231 = vmatmul.mubr.f32.gmra.mxu0 %v1162
    %v1232 = vpop.f32.mrf.mxu0
    %v1233 = vadd.f32 %v145, %v1232
    %v1234 = vpop.f32.mrf.mxu0
    %1235 = vdwg.mxu0
    %1236 = vmatprep.subr.mxu0 0.0
    %1237 = vmatpush1.msra.mxu0 %v119
    %1238 = vmatprep.subr.mxu0 0.0
    %1239 = vmatpush1.msra.mxu0 %v118
    %1240 = vmatprep.subr.mxu0 0.0
    %1241 = vmatpush1.msra.mxu0 %v117
    %1242 = vmatprep.subr.mxu0 0.0
    %1243 = vmatpush1.msra.mxu0 %v116
    %1244 = vmatprep.subr.mxu0 0.0
    %1245 = vmatpush1.msra.mxu0 %v115
    %1246 = vmatprep.subr.mxu0 0.0
    %1247 = vmatpush1.msra.mxu0 %v114
    %1248 = vmatprep.subr.mxu0 0.0
    %1249 = vmatpush1.msra.mxu0 %v113
    %1250 = vmatprep.subr.mxu0 0.0
    %1251 = vmatpush1.msra.mxu0 %v112
    %1252 = vmatprep.subr.mxu0 0.0
    %1253 = vmatpush1.msra.mxu0 %v111
    %1254 = vmatprep.subr.mxu0 0.0
    %1255 = vmatpush1.msra.mxu0 %v110
    %1256 = vmatprep.subr.mxu0 0.0
    %1257 = vmatpush1.msra.mxu0 %v109
    %1258 = vmatprep.subr.mxu0 0.0
    %1259 = vmatpush1.msra.mxu0 %v108
    %1260 = vmatprep.subr.mxu0 0.0
    %1261 = vmatpush1.msra.mxu0 %v107
    %1262 = vmatprep.subr.mxu0 0.0
    %1263 = vmatpush1.msra.mxu0 %v106
    %1264 = vmatprep.subr.mxu0 0.0
    %1265 = vmatpush1.msra.mxu0 %v105
    %1266 = vmatprep.subr.mxu0 0.0
    %1267 = vmatpush1.msra.mxu0 %v104
    %1268 = vmatprep.subr.mxu0 0.0
    %1269 = vmatpush2.msra.mxu0 %v135
    %1270 = vmatprep.subr.mxu0 0.0
    %1271 = vmatpush2.msra.mxu0 %v134
    %1272 = vmatprep.subr.mxu0 0.0
    %1273 = vmatpush2.msra.mxu0 %v133
    %1274 = vmatprep.subr.mxu0 0.0
    %1275 = vmatpush2.msra.mxu0 %v132
    %1276 = vmatprep.subr.mxu0 0.0
    %1277 = vmatpush2.msra.mxu0 %v131
    %1278 = vmatprep.subr.mxu0 0.0
    %1279 = vmatpush2.msra.mxu0 %v130
    %1280 = vmatprep.subr.mxu0 0.0
    %1281 = vmatpush2.msra.mxu0 %v129
    %1282 = vmatprep.subr.mxu0 0.0
    %1283 = vmatpush2.msra.mxu0 %v128
    %1284 = vmatprep.subr.mxu0 0.0
    %1285 = vmatpush2.msra.mxu0 %v127
    %1286 = vmatprep.subr.mxu0 0.0
    %1287 = vmatpush2.msra.mxu0 %v126
    %1288 = vmatprep.subr.mxu0 0.0
    %1289 = vmatpush2.msra.mxu0 %v125
    %1290 = vmatprep.subr.mxu0 0.0
    %1291 = vmatpush2.msra.mxu0 %v124
    %1292 = vmatprep.subr.mxu0 0.0
    %1293 = vmatpush2.msra.mxu0 %v123
    %1294 = vmatprep.subr.mxu0 0.0
    %1295 = vmatpush2.msra.mxu0 %v122
    %1296 = vmatprep.subr.mxu0 0.0
    %1297 = vmatpush2.msra.mxu0 %v121
    %1298 = vmatprep.subr.mxu0 0.0
    %1299 = vmatpush2.msra.mxu0 %v120
    %1300 = vmatprep.mubr.f32.mxu0 %v1165
    %1301 = vmatmul.mubr.f32.gmra.mxu0 %v1164
    %v1302 = vpop.f32.mrf.mxu0
    %v1303 = vadd.f32 %v1233, %v1302
    %v1304 = vpop.f32.mrf.mxu0
    %1305 = vdwg.mxu0
    %v1306 = vld [vmem:[#allocation2] sm:$0xff]
    %v1307 = vld [vmem:[#allocation3] sm:$0xff]
    %vm1308 = vcmask 261120
    %v1310 = vsel %vm1308, %v1306, 0
    %1312 = vmatprep.subr.mxu0 0.0
    %1313 = vmatpush1.msra.mxu0 0.0
    %1314 = vmatprep.subr.mxu0 0.0
    %1315 = vmatpush1.msra.mxu0 0.0
    %1316 = vmatprep.subr.mxu0 0.0
    %1317 = vmatpush1.msra.mxu0 0.0
    %1318 = vmatprep.subr.mxu0 0.0
    %1319 = vmatpush1.msra.mxu0 0.0
    %1320 = vmatprep.subr.mxu0 0.0
    %1321 = vmatpush1.msra.mxu0 0.0
    %1322 = vmatprep.subr.mxu0 0.0
    %1323 = vmatpush1.msra.mxu0 0.0
    %1324 = vmatprep.subr.mxu0 0.0
    %1325 = vmatpush1.msra.mxu0 0.0
    %1326 = vmatprep.subr.mxu0 0.0
    %1327 = vmatpush1.msra.mxu0 0.0
    %1328 = vmatprep.subr.mxu0 0.0
    %1329 = vmatpush1.msra.mxu0 0.0
    %1330 = vmatprep.subr.mxu0 0.0
    %1331 = vmatpush1.msra.mxu0 0.0
    %1332 = vmatprep.subr.mxu0 0.0
    %1333 = vmatpush1.msra.mxu0 0.0
    %1334 = vmatprep.subr.mxu0 0.0
    %1335 = vmatpush1.msra.mxu0 0.0
    %1336 = vmatprep.subr.mxu0 0.0
    %1337 = vmatpush1.msra.mxu0 %v139
    %1338 = vmatprep.subr.mxu0 0.0
    %1339 = vmatpush1.msra.mxu0 %v138
    %1340 = vmatprep.subr.mxu0 0.0
    %1341 = vmatpush1.msra.mxu0 %v137
    %1342 = vmatprep.subr.mxu0 0.0
    %1343 = vmatpush1.msra.mxu0 %v136
    %1344 = vmatprep.subr.mxu0 0.0
    %1345 = vmatpush2.msra.mxu0 0.0
    %1346 = vmatprep.subr.mxu0 0.0
    %1347 = vmatpush2.msra.mxu0 0.0
    %1348 = vmatprep.subr.mxu0 0.0
    %1349 = vmatpush2.msra.mxu0 0.0
    %1350 = vmatprep.subr.mxu0 0.0
    %1351 = vmatpush2.msra.mxu0 0.0
    %1352 = vmatprep.subr.mxu0 0.0
    %1353 = vmatpush2.msra.mxu0 0.0
    %1354 = vmatprep.subr.mxu0 0.0
    %1355 = vmatpush2.msra.mxu0 0.0
    %1356 = vmatprep.subr.mxu0 0.0
    %1357 = vmatpush2.msra.mxu0 0.0
    %1358 = vmatprep.subr.mxu0 0.0
    %1359 = vmatpush2.msra.mxu0 0.0
    %1360 = vmatprep.subr.mxu0 0.0
    %1361 = vmatpush2.msra.mxu0 0.0
    %1362 = vmatprep.subr.mxu0 0.0
    %1363 = vmatpush2.msra.mxu0 0.0
    %1364 = vmatprep.subr.mxu0 0.0
    %1365 = vmatpush2.msra.mxu0 0.0
    %1366 = vmatprep.subr.mxu0 0.0
    %1367 = vmatpush2.msra.mxu0 0.0
    %1368 = vmatprep.subr.mxu0 0.0
    %1369 = vmatpush2.msra.mxu0 0.0
    %1370 = vmatprep.subr.mxu0 0.0
    %1371 = vmatpush2.msra.mxu0 0.0
    %1372 = vmatprep.subr.mxu0 0.0
    %1373 = vmatpush2.msra.mxu0 0.0
    %1374 = vmatprep.subr.mxu0 0.0
    %1375 = vmatpush2.msra.mxu0 0.0
    %1376 = vmatprep.mubr.f32.mxu0 0.0
    %1377 = vmatmul.mubr.f32.gmra.mxu0 %v1310
    %v1378 = vpop.f32.mrf.mxu0
    %v1379 = vadd.f32 0.0, %v1378
    %v1380 = vpop.f32.mrf.mxu0
    %1381 = vdwg.mxu0
    %v1382 = vadd.f32 %v295, %v1379
    %v1383 = vxor.u32 %v1382, 2147483648
    %v1384 = vmul.f32 %v1383, 1.442695
    %v1385 = vpow.pop %v1384
    %v1386 = vadd.f32 %v1385, 1.0
    %v1387 = vrcp.pop %v1386
    %v1388 = vmul.f32 1.0, %v1387
    %v1389 = vmul.f32 %v1388, 2.0
    %v1390 = vsub.f32 %v1389, 1.0
    %1392 = vrot.lane.b32.xlu0 %v1307, 32
    %v1393 = vpop.permute.xlu0 %1392
    %v1395 = vmul.f32 %v1388, %v1393
    %1397 = vrot.lane.b32.xlu0 %v1390, 64
    %v1398 = vpop.permute.xlu0 %1397
    %v1400 = vmul.f32 %v1388, %v1398
    %1402 = vrot.lane.b32.xlu0 %v1400, 32
    %v1403 = vpop.permute.xlu0 %1402
    %v1405 = vadd.f32 %v1395, %v1403
    %v1406 = vtanh.pop %v1405
    %1408 = vrot.lane.b32.xlu0 %v1406, 64
    %v1409 = vpop.permute.xlu0 %1408
    %v1411 = vmul.f32 %v1388, %v1409
    %1412 = vrot.lane.b32.xlu0 %v152, 96
    %v1413 = vpop.permute.xlu0 %1412
    %v1415 = vmul.f32 %v1411, %v1413
    %1417 = vrot.lane.b32.xlu0 %v1415, 32
    %v1418 = vpop.permute.xlu0 %1417
    %v1420 = vsel %vm1308, %v1418, 0.0
    %1421 = vadd.xlane.f32.xlu0 %v1420
    %v1422 = vpop.xlane.xlu0 %1421
    %vm1423 = vcmask 7168
    %1424 = vst.msk [vmem:[#allocation4] sm:$0xff] %vm1423, %v1422
    %1426 = vrot.lane.b32.xlu0 %v1411, 32
    %v1427 = vpop.permute.xlu0 %1426
    %v1428 = vsel %vm1308, %v1427, 0
    %1430 = vmatprep.subr.mxu0 0.0
    %1431 = vmatpush1.msra.mxu0 0.0
    %1432 = vmatprep.subr.mxu0 0.0
    %1433 = vmatpush1.msra.mxu0 0.0
    %1434 = vmatprep.subr.mxu0 0.0
    %1435 = vmatpush1.msra.mxu0 0.0
    %1436 = vmatprep.subr.mxu0 0.0
    %1437 = vmatpush1.msra.mxu0 0.0
    %1438 = vmatprep.subr.mxu0 0.0
    %1439 = vmatpush1.msra.mxu0 0.0
    %1440 = vmatprep.subr.mxu0 0.0
    %1441 = vmatpush1.msra.mxu0 0.0
    %1442 = vmatprep.subr.mxu0 0.0
    %1443 = vmatpush1.msra.mxu0 0.0
    %1444 = vmatprep.subr.mxu0 0.0
    %1445 = vmatpush1.msra.mxu0 0.0
    %1446 = vmatprep.subr.mxu0 0.0
    %1447 = vmatpush1.msra.mxu0 0.0
    %1448 = vmatprep.subr.mxu0 0.0
    %1449 = vmatpush1.msra.mxu0 0.0
    %1450 = vmatprep.subr.mxu0 0.0
    %1451 = vmatpush1.msra.mxu0 0.0
    %1452 = vmatprep.subr.mxu0 0.0
    %1453 = vmatpush1.msra.mxu0 0.0
    %1454 = vmatprep.subr.mxu0 0.0
    %1455 = vmatpush1.msra.mxu0 %v139
    %1456 = vmatprep.subr.mxu0 0.0
    %1457 = vmatpush1.msra.mxu0 %v138
    %1458 = vmatprep.subr.mxu0 0.0
    %1459 = vmatpush1.msra.mxu0 %v137
    %1460 = vmatprep.subr.mxu0 0.0
    %1461 = vmatpush1.msra.mxu0 %v136
    %1462 = vmatprep.subr.mxu0 0.0
    %1463 = vmatpush2.msra.mxu0 0.0
    %1464 = vmatprep.subr.mxu0 0.0
    %1465 = vmatpush2.msra.mxu0 0.0
    %1466 = vmatprep.subr.mxu0 0.0
    %1467 = vmatpush2.msra.mxu0 0.0
    %1468 = vmatprep.subr.mxu0 0.0
    %1469 = vmatpush2.msra.mxu0 0.0
    %1470 = vmatprep.subr.mxu0 0.0
    %1471 = vmatpush2.msra.mxu0 0.0
    %1472 = vmatprep.subr.mxu0 0.0
    %1473 = vmatpush2.msra.mxu0 0.0
    %1474 = vmatprep.subr.mxu0 0.0
    %1475 = vmatpush2.msra.mxu0 0.0
    %1476 = vmatprep.subr.mxu0 0.0
    %1477 = vmatpush2.msra.mxu0 0.0
    %1478 = vmatprep.subr.mxu0 0.0
    %1479 = vmatpush2.msra.mxu0 0.0
    %1480 = vmatprep.subr.mxu0 0.0
    %1481 = vmatpush2.msra.mxu0 0.0
    %1482 = vmatprep.subr.mxu0 0.0
    %1483 = vmatpush2.msra.mxu0 0.0
    %1484 = vmatprep.subr.mxu0 0.0
    %1485 = vmatpush2.msra.mxu0 0.0
    %1486 = vmatprep.subr.mxu0 0.0
    %1487 = vmatpush2.msra.mxu0 0.0
    %1488 = vmatprep.subr.mxu0 0.0
    %1489 = vmatpush2.msra.mxu0 0.0
    %1490 = vmatprep.subr.mxu0 0.0
    %1491 = vmatpush2.msra.mxu0 0.0
    %1492 = vmatprep.subr.mxu0 0.0
    %1493 = vmatpush2.msra.mxu0 0.0
    %1494 = vmatprep.mubr.f32.mxu0 0.0
    %1495 = vmatmul.mubr.f32.gmra.mxu0 %v1428
    %v1496 = vpop.f32.mrf.mxu0
    %v1497 = vadd.f32 0.0, %v1496
    %v1498 = vpop.f32.mrf.mxu0
    %1499 = vdwg.mxu0
    %v1500 = vadd.f32 %v439, %v1497
    %v1501 = vxor.u32 %v1500, 2147483648
    %v1502 = vmul.f32 %v1501, 1.442695
    %v1503 = vpow.pop %v1502
    %v1504 = vadd.f32 %v1503, 1.0
    %v1505 = vrcp.pop %v1504
    %v1506 = vmul.f32 1.0, %v1505
    %v1507 = vmul.f32 %v1506, 2.0
    %v1508 = vsub.f32 %v1507, 1.0
    %v1509 = vmul.f32 %v1506, %v1405
    %1511 = vrot.lane.b32.xlu0 %v1508, 64
    %v1512 = vpop.permute.xlu0 %1511
    %v1514 = vmul.f32 %v1506, %v1512
    %1516 = vrot.lane.b32.xlu0 %v1514, 32
    %v1517 = vpop.permute.xlu0 %1516
    %v1519 = vadd.f32 %v1509, %v1517
    %v1520 = vtanh.pop %v1519
    %1522 = vrot.lane.b32.xlu0 %v1520, 64
    %v1523 = vpop.permute.xlu0 %1522
    %v1525 = vmul.f32 %v1506, %v1523
    %v1526 = vmul.f32 %v1525, %v1413
    %1528 = vrot.lane.b32.xlu0 %v1526, 32
    %v1529 = vpop.permute.xlu0 %1528
    %v1531 = vsel %vm1308, %v1529, 0.0
    %1532 = vadd.xlane.f32.xlu0 %v1531
    %v1533 = vpop.xlane.xlu0 %1532
    %vm1534 = vcmask 15368
    %1535 = vst.msk [vmem:[#allocation4] sm:$0xff] %vm1534, %v1533
    %1537 = vrot.lane.b32.xlu0 %v1525, 32
    %v1538 = vpop.permute.xlu0 %1537
    %v1539 = vsel %vm1308, %v1538, 0
    %1541 = vmatprep.subr.mxu0 0.0
    %1542 = vmatpush1.msra.mxu0 0.0
    %1543 = vmatprep.subr.mxu0 0.0
    %1544 = vmatpush1.msra.mxu0 0.0
    %1545 = vmatprep.subr.mxu0 0.0
    %1546 = vmatpush1.msra.mxu0 0.0
    %1547 = vmatprep.subr.mxu0 0.0
    %1548 = vmatpush1.msra.mxu0 0.0
    %1549 = vmatprep.subr.mxu0 0.0
    %1550 = vmatpush1.msra.mxu0 0.0
    %1551 = vmatprep.subr.mxu0 0.0
    %1552 = vmatpush1.msra.mxu0 0.0
    %1553 = vmatprep.subr.mxu0 0.0
    %1554 = vmatpush1.msra.mxu0 0.0
    %1555 = vmatprep.subr.mxu0 0.0
    %1556 = vmatpush1.msra.mxu0 0.0
    %1557 = vmatprep.subr.mxu0 0.0
    %1558 = vmatpush1.msra.mxu0 0.0
    %1559 = vmatprep.subr.mxu0 0.0
    %1560 = vmatpush1.msra.mxu0 0.0
    %1561 = vmatprep.subr.mxu0 0.0
    %1562 = vmatpush1.msra.mxu0 0.0
    %1563 = vmatprep.subr.mxu0 0.0
    %1564 = vmatpush1.msra.mxu0 0.0
    %1565 = vmatprep.subr.mxu0 0.0
    %1566 = vmatpush1.msra.mxu0 %v139
    %1567 = vmatprep.subr.mxu0 0.0
    %1568 = vmatpush1.msra.mxu0 %v138
    %1569 = vmatprep.subr.mxu0 0.0
    %1570 = vmatpush1.msra.mxu0 %v137
    %1571 = vmatprep.subr.mxu0 0.0
    %1572 = vmatpush1.msra.mxu0 %v136
    %1573 = vmatprep.subr.mxu0 0.0
    %1574 = vmatpush2.msra.mxu0 0.0
    %1575 = vmatprep.subr.mxu0 0.0
    %1576 = vmatpush2.msra.mxu0 0.0
    %1577 = vmatprep.subr.mxu0 0.0
    %1578 = vmatpush2.msra.mxu0 0.0
    %1579 = vmatprep.subr.mxu0 0.0
    %1580 = vmatpush2.msra.mxu0 0.0
    %1581 = vmatprep.subr.mxu0 0.0
    %1582 = vmatpush2.msra.mxu0 0.0
    %1583 = vmatprep.subr.mxu0 0.0
    %1584 = vmatpush2.msra.mxu0 0.0
    %1585 = vmatprep.subr.mxu0 0.0
    %1586 = vmatpush2.msra.mxu0 0.0
    %1587 = vmatprep.subr.mxu0 0.0
    %1588 = vmatpush2.msra.mxu0 0.0
    %1589 = vmatprep.subr.mxu0 0.0
    %1590 = vmatpush2.msra.mxu0 0.0
    %1591 = vmatprep.subr.mxu0 0.0
    %1592 = vmatpush2.msra.mxu0 0.0
    %1593 = vmatprep.subr.mxu0 0.0
    %1594 = vmatpush2.msra.mxu0 0.0
    %1595 = vmatprep.subr.mxu0 0.0
    %1596 = vmatpush2.msra.mxu0 0.0
    %1597 = vmatprep.subr.mxu0 0.0
    %1598 = vmatpush2.msra.mxu0 0.0
    %1599 = vmatprep.subr.mxu0 0.0
    %1600 = vmatpush2.msra.mxu0 0.0
    %1601 = vmatprep.subr.mxu0 0.0
    %1602 = vmatpush2.msra.mxu0 0.0
    %1603 = vmatprep.subr.mxu0 0.0
    %1604 = vmatpush2.msra.mxu0 0.0
    %1605 = vmatprep.mubr.f32.mxu0 0.0
    %1606 = vmatmul.mubr.f32.gmra.mxu0 %v1539
    %v1607 = vpop.f32.mrf.mxu0
    %v1608 = vadd.f32 0.0, %v1607
    %v1609 = vpop.f32.mrf.mxu0
    %1610 = vdwg.mxu0
    %v1611 = vadd.f32 %v583, %v1608
    %v1612 = vxor.u32 %v1611, 2147483648
    %v1613 = vmul.f32 %v1612, 1.442695
    %v1614 = vpow.pop %v1613
    %v1615 = vadd.f32 %v1614, 1.0
    %v1616 = vrcp.pop %v1615
    %v1617 = vmul.f32 1.0, %v1616
    %v1618 = vmul.f32 %v1617, 2.0
    %v1619 = vsub.f32 %v1618, 1.0
    %v1620 = vmul.f32 %v1617, %v1519
    %1622 = vrot.lane.b32.xlu0 %v1619, 64
    %v1623 = vpop.permute.xlu0 %1622
    %v1625 = vmul.f32 %v1617, %v1623
    %1627 = vrot.lane.b32.xlu0 %v1625, 32
    %v1628 = vpop.permute.xlu0 %1627
    %v1630 = vadd.f32 %v1620, %v1628
    %v1631 = vtanh.pop %v1630
    %1633 = vrot.lane.b32.xlu0 %v1631, 64
    %v1634 = vpop.permute.xlu0 %1633
    %v1636 = vmul.f32 %v1617, %v1634
    %v1637 = vmul.f32 %v1636, %v1413
    %1639 = vrot.lane.b32.xlu0 %v1637, 32
    %v1640 = vpop.permute.xlu0 %1639
    %v1642 = vsel %vm1308, %v1640, 0.0
    %1643 = vadd.xlane.f32.xlu0 %v1642
    %v1644 = vpop.xlane.xlu0 %1643
    %vm1645 = vcmask 23568
    %1646 = vst.msk [vmem:[#allocation4] sm:$0xff] %vm1645, %v1644
    %1648 = vrot.lane.b32.xlu0 %v1636, 32
    %v1649 = vpop.permute.xlu0 %1648
    %v1650 = vsel %vm1308, %v1649, 0
    %1652 = vmatprep.subr.mxu0 0.0
    %1653 = vmatpush1.msra.mxu0 0.0
    %1654 = vmatprep.subr.mxu0 0.0
    %1655 = vmatpush1.msra.mxu0 0.0
    %1656 = vmatprep.subr.mxu0 0.0
    %1657 = vmatpush1.msra.mxu0 0.0
    %1658 = vmatprep.subr.mxu0 0.0
    %1659 = vmatpush1.msra.mxu0 0.0
    %1660 = vmatprep.subr.mxu0 0.0
    %1661 = vmatpush1.msra.mxu0 0.0
    %1662 = vmatprep.subr.mxu0 0.0
    %1663 = vmatpush1.msra.mxu0 0.0
    %1664 = vmatprep.subr.mxu0 0.0
    %1665 = vmatpush1.msra.mxu0 0.0
    %1666 = vmatprep.subr.mxu0 0.0
    %1667 = vmatpush1.msra.mxu0 0.0
    %1668 = vmatprep.subr.mxu0 0.0
    %1669 = vmatpush1.msra.mxu0 0.0
    %1670 = vmatprep.subr.mxu0 0.0
    %1671 = vmatpush1.msra.mxu0 0.0
    %1672 = vmatprep.subr.mxu0 0.0
    %1673 = vmatpush1.msra.mxu0 0.0
    %1674 = vmatprep.subr.mxu0 0.0
    %1675 = vmatpush1.msra.mxu0 0.0
    %1676 = vmatprep.subr.mxu0 0.0
    %1677 = vmatpush1.msra.mxu0 %v139
    %1678 = vmatprep.subr.mxu0 0.0
    %1679 = vmatpush1.msra.mxu0 %v138
    %1680 = vmatprep.subr.mxu0 0.0
    %1681 = vmatpush1.msra.mxu0 %v137
    %1682 = vmatprep.subr.mxu0 0.0
    %1683 = vmatpush1.msra.mxu0 %v136
    %1684 = vmatprep.subr.mxu0 0.0
    %1685 = vmatpush2.msra.mxu0 0.0
    %1686 = vmatprep.subr.mxu0 0.0
    %1687 = vmatpush2.msra.mxu0 0.0
    %1688 = vmatprep.subr.mxu0 0.0
    %1689 = vmatpush2.msra.mxu0 0.0
    %1690 = vmatprep.subr.mxu0 0.0
    %1691 = vmatpush2.msra.mxu0 0.0
    %1692 = vmatprep.subr.mxu0 0.0
    %1693 = vmatpush2.msra.mxu0 0.0
    %1694 = vmatprep.subr.mxu0 0.0
    %1695 = vmatpush2.msra.mxu0 0.0
    %1696 = vmatprep.subr.mxu0 0.0
    %1697 = vmatpush2.msra.mxu0 0.0
    %1698 = vmatprep.subr.mxu0 0.0
    %1699 = vmatpush2.msra.mxu0 0.0
    %1700 = vmatprep.subr.mxu0 0.0
    %1701 = vmatpush2.msra.mxu0 0.0
    %1702 = vmatprep.subr.mxu0 0.0
    %1703 = vmatpush2.msra.mxu0 0.0
    %1704 = vmatprep.subr.mxu0 0.0
    %1705 = vmatpush2.msra.mxu0 0.0
    %1706 = vmatprep.subr.mxu0 0.0
    %1707 = vmatpush2.msra.mxu0 0.0
    %1708 = vmatprep.subr.mxu0 0.0
    %1709 = vmatpush2.msra.mxu0 0.0
    %1710 = vmatprep.subr.mxu0 0.0
    %1711 = vmatpush2.msra.mxu0 0.0
    %1712 = vmatprep.subr.mxu0 0.0
    %1713 = vmatpush2.msra.mxu0 0.0
    %1714 = vmatprep.subr.mxu0 0.0
    %1715 = vmatpush2.msra.mxu0 0.0
    %1716 = vmatprep.mubr.f32.mxu0 0.0
    %1717 = vmatmul.mubr.f32.gmra.mxu0 %v1650
    %v1718 = vpop.f32.mrf.mxu0
    %v1719 = vadd.f32 0.0, %v1718
    %v1720 = vpop.f32.mrf.mxu0
    %1721 = vdwg.mxu0
    %v1722 = vadd.f32 %v727, %v1719
    %v1723 = vxor.u32 %v1722, 2147483648
    %v1724 = vmul.f32 %v1723, 1.442695
    %v1725 = vpow.pop %v1724
    %v1726 = vadd.f32 %v1725, 1.0
    %v1727 = vrcp.pop %v1726
    %v1728 = vmul.f32 1.0, %v1727
    %v1729 = vmul.f32 %v1728, 2.0
    %v1730 = vsub.f32 %v1729, 1.0
    %v1731 = vmul.f32 %v1728, %v1630
    %1733 = vrot.lane.b32.xlu0 %v1730, 64
    %v1734 = vpop.permute.xlu0 %1733
    %v1736 = vmul.f32 %v1728, %v1734
    %1738 = vrot.lane.b32.xlu0 %v1736, 32
    %v1739 = vpop.permute.xlu0 %1738
    %v1741 = vadd.f32 %v1731, %v1739
    %v1742 = vtanh.pop %v1741
    %1744 = vrot.lane.b32.xlu0 %v1742, 64
    %v1745 = vpop.permute.xlu0 %1744
    %v1747 = vmul.f32 %v1728, %v1745
    %v1748 = vmul.f32 %v1747, %v1413
    %1750 = vrot.lane.b32.xlu0 %v1748, 32
    %v1751 = vpop.permute.xlu0 %1750
    %v1753 = vsel %vm1308, %v1751, 0.0
    %1754 = vadd.xlane.f32.xlu0 %v1753
    %v1755 = vpop.xlane.xlu0 %1754
    %vm1756 = vcmask 31768
    %1757 = vst.msk [vmem:[#allocation4] sm:$0xff] %vm1756, %v1755
    %1759 = vrot.lane.b32.xlu0 %v1747, 32
    %v1760 = vpop.permute.xlu0 %1759
    %v1761 = vsel %vm1308, %v1760, 0
    %1763 = vmatprep.subr.mxu0 0.0
    %1764 = vmatpush1.msra.mxu0 0.0
    %1765 = vmatprep.subr.mxu0 0.0
    %1766 = vmatpush1.msra.mxu0 0.0
    %1767 = vmatprep.subr.mxu0 0.0
    %1768 = vmatpush1.msra.mxu0 0.0
    %1769 = vmatprep.subr.mxu0 0.0
    %1770 = vmatpush1.msra.mxu0 0.0
    %1771 = vmatprep.subr.mxu0 0.0
    %1772 = vmatpush1.msra.mxu0 0.0
    %1773 = vmatprep.subr.mxu0 0.0
    %1774 = vmatpush1.msra.mxu0 0.0
    %1775 = vmatprep.subr.mxu0 0.0
    %1776 = vmatpush1.msra.mxu0 0.0
    %1777 = vmatprep.subr.mxu0 0.0
    %1778 = vmatpush1.msra.mxu0 0.0
    %1779 = vmatprep.subr.mxu0 0.0
    %1780 = vmatpush1.msra.mxu0 0.0
    %1781 = vmatprep.subr.mxu0 0.0
    %1782 = vmatpush1.msra.mxu0 0.0
    %1783 = vmatprep.subr.mxu0 0.0
    %1784 = vmatpush1.msra.mxu0 0.0
    %1785 = vmatprep.subr.mxu0 0.0
    %1786 = vmatpush1.msra.mxu0 0.0
    %1787 = vmatprep.subr.mxu0 0.0
    %1788 = vmatpush1.msra.mxu0 %v139
    %1789 = vmatprep.subr.mxu0 0.0
    %1790 = vmatpush1.msra.mxu0 %v138
    %1791 = vmatprep.subr.mxu0 0.0
    %1792 = vmatpush1.msra.mxu0 %v137
    %1793 = vmatprep.subr.mxu0 0.0
    %1794 = vmatpush1.msra.mxu0 %v136
    %1795 = vmatprep.subr.mxu0 0.0
    %1796 = vmatpush2.msra.mxu0 0.0
    %1797 = vmatprep.subr.mxu0 0.0
    %1798 = vmatpush2.msra.mxu0 0.0
    %1799 = vmatprep.subr.mxu0 0.0
    %1800 = vmatpush2.msra.mxu0 0.0
    %1801 = vmatprep.subr.mxu0 0.0
    %1802 = vmatpush2.msra.mxu0 0.0
    %1803 = vmatprep.subr.mxu0 0.0
    %1804 = vmatpush2.msra.mxu0 0.0
    %1805 = vmatprep.subr.mxu0 0.0
    %1806 = vmatpush2.msra.mxu0 0.0
    %1807 = vmatprep.subr.mxu0 0.0
    %1808 = vmatpush2.msra.mxu0 0.0
    %1809 = vmatprep.subr.mxu0 0.0
    %1810 = vmatpush2.msra.mxu0 0.0
    %1811 = vmatprep.subr.mxu0 0.0
    %1812 = vmatpush2.msra.mxu0 0.0
    %1813 = vmatprep.subr.mxu0 0.0
    %1814 = vmatpush2.msra.mxu0 0.0
    %1815 = vmatprep.subr.mxu0 0.0
    %1816 = vmatpush2.msra.mxu0 0.0
    %1817 = vmatprep.subr.mxu0 0.0
    %1818 = vmatpush2.msra.mxu0 0.0
    %1819 = vmatprep.subr.mxu0 0.0
    %1820 = vmatpush2.msra.mxu0 0.0
    %1821 = vmatprep.subr.mxu0 0.0
    %1822 = vmatpush2.msra.mxu0 0.0
    %1823 = vmatprep.subr.mxu0 0.0
    %1824 = vmatpush2.msra.mxu0 0.0
    %1825 = vmatprep.subr.mxu0 0.0
    %1826 = vmatpush2.msra.mxu0 0.0
    %1827 = vmatprep.mubr.f32.mxu0 0.0
    %1828 = vmatmul.mubr.f32.gmra.mxu0 %v1761
    %v1829 = vpop.f32.mrf.mxu0
    %v1830 = vadd.f32 0.0, %v1829
    %v1831 = vpop.f32.mrf.mxu0
    %1832 = vdwg.mxu0
    %v1833 = vadd.f32 %v871, %v1830
    %v1834 = vxor.u32 %v1833, 2147483648
    %v1835 = vmul.f32 %v1834, 1.442695
    %v1836 = vpow.pop %v1835
    %v1837 = vadd.f32 %v1836, 1.0
    %v1838 = vrcp.pop %v1837
    %v1839 = vmul.f32 1.0, %v1838
    %v1840 = vmul.f32 %v1839, 2.0
    %v1841 = vsub.f32 %v1840, 1.0
    %v1842 = vmul.f32 %v1839, %v1741
    %1844 = vrot.lane.b32.xlu0 %v1841, 64
    %v1845 = vpop.permute.xlu0 %1844
    %v1847 = vmul.f32 %v1839, %v1845
    %1849 = vrot.lane.b32.xlu0 %v1847, 32
    %v1850 = vpop.permute.xlu0 %1849
    %v1852 = vadd.f32 %v1842, %v1850
    %v1853 = vtanh.pop %v1852
    %1855 = vrot.lane.b32.xlu0 %v1853, 64
    %v1856 = vpop.permute.xlu0 %1855
    %v1858 = vmul.f32 %v1839, %v1856
    %v1859 = vmul.f32 %v1858, %v1413
    %1861 = vrot.lane.b32.xlu0 %v1859, 32
    %v1862 = vpop.permute.xlu0 %1861
    %v1864 = vsel %vm1308, %v1862, 0.0
    %1865 = vadd.xlane.f32.xlu0 %v1864
    %v1866 = vpop.xlane.xlu0 %1865
    %vm1867 = vcmask 39968
    %1868 = vst.msk [vmem:[#allocation4] sm:$0xff] %vm1867, %v1866
    %1870 = vrot.lane.b32.xlu0 %v1858, 32
    %v1871 = vpop.permute.xlu0 %1870
    %v1872 = vsel %vm1308, %v1871, 0
    %1874 = vmatprep.subr.mxu0 0.0
    %1875 = vmatpush1.msra.mxu0 0.0
    %1876 = vmatprep.subr.mxu0 0.0
    %1877 = vmatpush1.msra.mxu0 0.0
    %1878 = vmatprep.subr.mxu0 0.0
    %1879 = vmatpush1.msra.mxu0 0.0
    %1880 = vmatprep.subr.mxu0 0.0
    %1881 = vmatpush1.msra.mxu0 0.0
    %1882 = vmatprep.subr.mxu0 0.0
    %1883 = vmatpush1.msra.mxu0 0.0
    %1884 = vmatprep.subr.mxu0 0.0
    %1885 = vmatpush1.msra.mxu0 0.0
    %1886 = vmatprep.subr.mxu0 0.0
    %1887 = vmatpush1.msra.mxu0 0.0
    %1888 = vmatprep.subr.mxu0 0.0
    %1889 = vmatpush1.msra.mxu0 0.0
    %1890 = vmatprep.subr.mxu0 0.0
    %1891 = vmatpush1.msra.mxu0 0.0
    %1892 = vmatprep.subr.mxu0 0.0
    %1893 = vmatpush1.msra.mxu0 0.0
    %1894 = vmatprep.subr.mxu0 0.0
    %1895 = vmatpush1.msra.mxu0 0.0
    %1896 = vmatprep.subr.mxu0 0.0
    %1897 = vmatpush1.msra.mxu0 0.0
    %1898 = vmatprep.subr.mxu0 0.0
    %1899 = vmatpush1.msra.mxu0 %v139
    %1900 = vmatprep.subr.mxu0 0.0
    %1901 = vmatpush1.msra.mxu0 %v138
    %1902 = vmatprep.subr.mxu0 0.0
    %1903 = vmatpush1.msra.mxu0 %v137
    %1904 = vmatprep.subr.mxu0 0.0
    %1905 = vmatpush1.msra.mxu0 %v136
    %1906 = vmatprep.subr.mxu0 0.0
    %1907 = vmatpush2.msra.mxu0 0.0
    %1908 = vmatprep.subr.mxu0 0.0
    %1909 = vmatpush2.msra.mxu0 0.0
    %1910 = vmatprep.subr.mxu0 0.0
    %1911 = vmatpush2.msra.mxu0 0.0
    %1912 = vmatprep.subr.mxu0 0.0
    %1913 = vmatpush2.msra.mxu0 0.0
    %1914 = vmatprep.subr.mxu0 0.0
    %1915 = vmatpush2.msra.mxu0 0.0
    %1916 = vmatprep.subr.mxu0 0.0
    %1917 = vmatpush2.msra.mxu0 0.0
    %1918 = vmatprep.subr.mxu0 0.0
    %1919 = vmatpush2.msra.mxu0 0.0
    %1920 = vmatprep.subr.mxu0 0.0
    %1921 = vmatpush2.msra.mxu0 0.0
    %1922 = vmatprep.subr.mxu0 0.0
    %1923 = vmatpush2.msra.mxu0 0.0
    %1924 = vmatprep.subr.mxu0 0.0
    %1925 = vmatpush2.msra.mxu0 0.0
    %1926 = vmatprep.subr.mxu0 0.0
    %1927 = vmatpush2.msra.mxu0 0.0
    %1928 = vmatprep.subr.mxu0 0.0
    %1929 = vmatpush2.msra.mxu0 0.0
    %1930 = vmatprep.subr.mxu0 0.0
    %1931 = vmatpush2.msra.mxu0 0.0
    %1932 = vmatprep.subr.mxu0 0.0
    %1933 = vmatpush2.msra.mxu0 0.0
    %1934 = vmatprep.subr.mxu0 0.0
    %1935 = vmatpush2.msra.mxu0 0.0
    %1936 = vmatprep.subr.mxu0 0.0
    %1937 = vmatpush2.msra.mxu0 0.0
    %1938 = vmatprep.mubr.f32.mxu0 0.0
    %1939 = vmatmul.mubr.f32.gmra.mxu0 %v1872
    %v1940 = vpop.f32.mrf.mxu0
    %v1941 = vadd.f32 0.0, %v1940
    %v1942 = vpop.f32.mrf.mxu0
    %1943 = vdwg.mxu0
    %v1944 = vadd.f32 %v1015, %v1941
    %v1945 = vxor.u32 %v1944, 2147483648
    %v1946 = vmul.f32 %v1945, 1.442695
    %v1947 = vpow.pop %v1946
    %v1948 = vadd.f32 %v1947, 1.0
    %v1949 = vrcp.pop %v1948
    %v1950 = vmul.f32 1.0, %v1949
    %v1951 = vmul.f32 %v1950, 2.0
    %v1952 = vsub.f32 %v1951, 1.0
    %v1953 = vmul.f32 %v1950, %v1852
    %1955 = vrot.lane.b32.xlu0 %v1952, 64
    %v1956 = vpop.permute.xlu0 %1955
    %v1958 = vmul.f32 %v1950, %v1956
    %1960 = vrot.lane.b32.xlu0 %v1958, 32
    %v1961 = vpop.permute.xlu0 %1960
    %v1963 = vadd.f32 %v1953, %v1961
    %v1964 = vtanh.pop %v1963
    %1966 = vrot.lane.b32.xlu0 %v1964, 64
    %v1967 = vpop.permute.xlu0 %1966
    %v1969 = vmul.f32 %v1950, %v1967
    %v1970 = vmul.f32 %v1969, %v1413
    %1972 = vrot.lane.b32.xlu0 %v1970, 32
    %v1973 = vpop.permute.xlu0 %1972
    %v1975 = vsel %vm1308, %v1973, 0.0
    %1976 = vadd.xlane.f32.xlu0 %v1975
    %v1977 = vpop.xlane.xlu0 %1976
    %vm1978 = vcmask 48168
    %1979 = vst.msk [vmem:[#allocation4] sm:$0xff] %vm1978, %v1977
    %1981 = vrot.lane.b32.xlu0 %v1969, 32
    %v1982 = vpop.permute.xlu0 %1981
    %v1983 = vsel %vm1308, %v1982, 0
    %1985 = vmatprep.subr.mxu0 0.0
    %1986 = vmatpush1.msra.mxu0 0.0
    %1987 = vmatprep.subr.mxu0 0.0
    %1988 = vmatpush1.msra.mxu0 0.0
    %1989 = vmatprep.subr.mxu0 0.0
    %1990 = vmatpush1.msra.mxu0 0.0
    %1991 = vmatprep.subr.mxu0 0.0
    %1992 = vmatpush1.msra.mxu0 0.0
    %1993 = vmatprep.subr.mxu0 0.0
    %1994 = vmatpush1.msra.mxu0 0.0
    %1995 = vmatprep.subr.mxu0 0.0
    %1996 = vmatpush1.msra.mxu0 0.0
    %1997 = vmatprep.subr.mxu0 0.0
    %1998 = vmatpush1.msra.mxu0 0.0
    %1999 = vmatprep.subr.mxu0 0.0
    %2000 = vmatpush1.msra.mxu0 0.0
    %2001 = vmatprep.subr.mxu0 0.0
    %2002 = vmatpush1.msra.mxu0 0.0
    %2003 = vmatprep.subr.mxu0 0.0
    %2004 = vmatpush1.msra.mxu0 0.0
    %2005 = vmatprep.subr.mxu0 0.0
    %2006 = vmatpush1.msra.mxu0 0.0
    %2007 = vmatprep.subr.mxu0 0.0
    %2008 = vmatpush1.msra.mxu0 0.0
    %2009 = vmatprep.subr.mxu0 0.0
    %2010 = vmatpush1.msra.mxu0 %v139
    %2011 = vmatprep.subr.mxu0 0.0
    %2012 = vmatpush1.msra.mxu0 %v138
    %2013 = vmatprep.subr.mxu0 0.0
    %2014 = vmatpush1.msra.mxu0 %v137
    %2015 = vmatprep.subr.mxu0 0.0
    %2016 = vmatpush1.msra.mxu0 %v136
    %2017 = vmatprep.subr.mxu0 0.0
    %2018 = vmatpush2.msra.mxu0 0.0
    %2019 = vmatprep.subr.mxu0 0.0
    %2020 = vmatpush2.msra.mxu0 0.0
    %2021 = vmatprep.subr.mxu0 0.0
    %2022 = vmatpush2.msra.mxu0 0.0
    %2023 = vmatprep.subr.mxu0 0.0
    %2024 = vmatpush2.msra.mxu0 0.0
    %2025 = vmatprep.subr.mxu0 0.0
    %2026 = vmatpush2.msra.mxu0 0.0
    %2027 = vmatprep.subr.mxu0 0.0
    %2028 = vmatpush2.msra.mxu0 0.0
    %2029 = vmatprep.subr.mxu0 0.0
    %2030 = vmatpush2.msra.mxu0 0.0
    %2031 = vmatprep.subr.mxu0 0.0
    %2032 = vmatpush2.msra.mxu0 0.0
    %2033 = vmatprep.subr.mxu0 0.0
    %2034 = vmatpush2.msra.mxu0 0.0
    %2035 = vmatprep.subr.mxu0 0.0
    %2036 = vmatpush2.msra.mxu0 0.0
    %2037 = vmatprep.subr.mxu0 0.0
    %2038 = vmatpush2.msra.mxu0 0.0
    %2039 = vmatprep.subr.mxu0 0.0
    %2040 = vmatpush2.msra.mxu0 0.0
    %2041 = vmatprep.subr.mxu0 0.0
    %2042 = vmatpush2.msra.mxu0 0.0
    %2043 = vmatprep.subr.mxu0 0.0
    %2044 = vmatpush2.msra.mxu0 0.0
    %2045 = vmatprep.subr.mxu0 0.0
    %2046 = vmatpush2.msra.mxu0 0.0
    %2047 = vmatprep.subr.mxu0 0.0
    %2048 = vmatpush2.msra.mxu0 0.0
    %2049 = vmatprep.mubr.f32.mxu0 0.0
    %2050 = vmatmul.mubr.f32.gmra.mxu0 %v1983
    %v2051 = vpop.f32.mrf.mxu0
    %v2052 = vadd.f32 0.0, %v2051
    %v2053 = vpop.f32.mrf.mxu0
    %2054 = vdwg.mxu0
    %v2055 = vadd.f32 %v1159, %v2052
    %v2056 = vxor.u32 %v2055, 2147483648
    %v2057 = vmul.f32 %v2056, 1.442695
    %v2058 = vpow.pop %v2057
    %v2059 = vadd.f32 %v2058, 1.0
    %v2060 = vrcp.pop %v2059
    %v2061 = vmul.f32 1.0, %v2060
    %v2062 = vmul.f32 %v2061, 2.0
    %v2063 = vsub.f32 %v2062, 1.0
    %v2064 = vmul.f32 %v2061, %v1963
    %2066 = vrot.lane.b32.xlu0 %v2063, 64
    %v2067 = vpop.permute.xlu0 %2066
    %v2069 = vmul.f32 %v2061, %v2067
    %2071 = vrot.lane.b32.xlu0 %v2069, 32
    %v2072 = vpop.permute.xlu0 %2071
    %v2074 = vadd.f32 %v2064, %v2072
    %v2075 = vtanh.pop %v2074
    %2077 = vrot.lane.b32.xlu0 %v2075, 64
    %v2078 = vpop.permute.xlu0 %2077
    %v2080 = vmul.f32 %v2061, %v2078
    %v2081 = vmul.f32 %v2080, %v1413
    %2083 = vrot.lane.b32.xlu0 %v2081, 32
    %v2084 = vpop.permute.xlu0 %2083
    %v2086 = vsel %vm1308, %v2084, 0.0
    %2087 = vadd.xlane.f32.xlu0 %v2086
    %v2088 = vpop.xlane.xlu0 %2087
    %vm2089 = vcmask 56368
    %2090 = vst.msk [vmem:[#allocation4] sm:$0xff] %vm2089, %v2088
    %2092 = vrot.lane.b32.xlu0 %v2080, 32
    %v2093 = vpop.permute.xlu0 %2092
    %v2094 = vsel %vm1308, %v2093, 0
    %2096 = vmatprep.subr.mxu0 0.0
    %2097 = vmatpush1.msra.mxu0 0.0
    %2098 = vmatprep.subr.mxu0 0.0
    %2099 = vmatpush1.msra.mxu0 0.0
    %2100 = vmatprep.subr.mxu0 0.0
    %2101 = vmatpush1.msra.mxu0 0.0
    %2102 = vmatprep.subr.mxu0 0.0
    %2103 = vmatpush1.msra.mxu0 0.0
    %2104 = vmatprep.subr.mxu0 0.0
    %2105 = vmatpush1.msra.mxu0 0.0
    %2106 = vmatprep.subr.mxu0 0.0
    %2107 = vmatpush1.msra.mxu0 0.0
    %2108 = vmatprep.subr.mxu0 0.0
    %2109 = vmatpush1.msra.mxu0 0.0
    %2110 = vmatprep.subr.mxu0 0.0
    %2111 = vmatpush1.msra.mxu0 0.0
    %2112 = vmatprep.subr.mxu0 0.0
    %2113 = vmatpush1.msra.mxu0 0.0
    %2114 = vmatprep.subr.mxu0 0.0
    %2115 = vmatpush1.msra.mxu0 0.0
    %2116 = vmatprep.subr.mxu0 0.0
    %2117 = vmatpush1.msra.mxu0 0.0
    %2118 = vmatprep.subr.mxu0 0.0
    %2119 = vmatpush1.msra.mxu0 0.0
    %2120 = vmatprep.subr.mxu0 0.0
    %2121 = vmatpush1.msra.mxu0 %v139
    %2122 = vmatprep.subr.mxu0 0.0
    %2123 = vmatpush1.msra.mxu0 %v138
    %2124 = vmatprep.subr.mxu0 0.0
    %2125 = vmatpush1.msra.mxu0 %v137
    %2126 = vmatprep.subr.mxu0 0.0
    %2127 = vmatpush1.msra.mxu0 %v136
    %2128 = vmatprep.subr.mxu0 0.0
    %2129 = vmatpush2.msra.mxu0 0.0
    %2130 = vmatprep.subr.mxu0 0.0
    %2131 = vmatpush2.msra.mxu0 0.0
    %2132 = vmatprep.subr.mxu0 0.0
    %2133 = vmatpush2.msra.mxu0 0.0
    %2134 = vmatprep.subr.mxu0 0.0
    %2135 = vmatpush2.msra.mxu0 0.0
    %2136 = vmatprep.subr.mxu0 0.0
    %2137 = vmatpush2.msra.mxu0 0.0
    %2138 = vmatprep.subr.mxu0 0.0
    %2139 = vmatpush2.msra.mxu0 0.0
    %2140 = vmatprep.subr.mxu0 0.0
    %2141 = vmatpush2.msra.mxu0 0.0
    %2142 = vmatprep.subr.mxu0 0.0
    %2143 = vmatpush2.msra.mxu0 0.0
    %2144 = vmatprep.subr.mxu0 0.0
    %2145 = vmatpush2.msra.mxu0 0.0
    %2146 = vmatprep.subr.mxu0 0.0
    %2147 = vmatpush2.msra.mxu0 0.0
    %2148 = vmatprep.subr.mxu0 0.0
    %2149 = vmatpush2.msra.mxu0 0.0
    %2150 = vmatprep.subr.mxu0 0.0
    %2151 = vmatpush2.msra.mxu0 0.0
    %2152 = vmatprep.subr.mxu0 0.0
    %2153 = vmatpush2.msra.mxu0 0.0
    %2154 = vmatprep.subr.mxu0 0.0
    %2155 = vmatpush2.msra.mxu0 0.0
    %2156 = vmatprep.subr.mxu0 0.0
    %2157 = vmatpush2.msra.mxu0 0.0
    %2158 = vmatprep.subr.mxu0 0.0
    %2159 = vmatpush2.msra.mxu0 0.0
    %2160 = vmatprep.mubr.f32.mxu0 0.0
    %2161 = vmatmul.mubr.f32.gmra.mxu0 %v2094
    %v2162 = vpop.f32.mrf.mxu0
    %v2163 = vadd.f32 0.0, %v2162
    %v2164 = vpop.f32.mrf.mxu0
    %2165 = vdwg.mxu0
    %v2166 = vadd.f32 %v1303, %v2163
    %v2167 = vxor.u32 %v2166, 2147483648
    %v2168 = vmul.f32 %v2167, 1.442695
    %v2169 = vpow.pop %v2168
    %v2170 = vadd.f32 %v2169, 1.0
    %v2171 = vrcp.pop %v2170
    %v2172 = vmul.f32 1.0, %v2171
    %v2173 = vmul.f32 %v2172, 2.0
    %v2174 = vsub.f32 %v2173, 1.0
    %v2175 = vmul.f32 %v2172, %v2074
    %2177 = vrot.lane.b32.xlu0 %v2174, 64
    %v2178 = vpop.permute.xlu0 %2177
    %v2180 = vmul.f32 %v2172, %v2178
    %2182 = vrot.lane.b32.xlu0 %v2180, 32
    %v2183 = vpop.permute.xlu0 %2182
    %v2185 = vadd.f32 %v2175, %v2183
    %v2186 = vtanh.pop %v2185
    %2188 = vrot.lane.b32.xlu0 %v2186, 64
    %v2189 = vpop.permute.xlu0 %2188
    %v2191 = vmul.f32 %v2172, %v2189
    %v2192 = vmul.f32 %v2191, %v1413
    %2194 = vrot.lane.b32.xlu0 %v2192, 32
    %v2195 = vpop.permute.xlu0 %2194
    %v2197 = vsel %vm1308, %v2195, 0.0
    %2198 = vadd.xlane.f32.xlu0 %v2197
    %v2199 = vpop.xlane.xlu0 %2198
    %vm2200 = vcmask 64568
    %2201 = vst.msk [vmem:[#allocation4] sm:$0xff] %vm2200, %v2199
    %2203 = vrot.lane.b32.xlu0 %v2191, 32
    %v2204 = vpop.permute.xlu0 %2203
    %2206 = vst.msk [vmem:[#allocation2] sm:$0xff] %vm1308, %v2204
    %2208 = vrot.lane.b32.xlu0 %v2185, 96
    %v2209 = vpop.permute.xlu0 %2208
    %2211 = vst.msk [vmem:[#allocation3] sm:$0xff] %vm1308, %v2209
    %v2212 = vld [vmem:[#allocation4] sm:$0xff]
    %v2214 = vlaneseq
    %v2215 = vshrl.u32 %v2214, 7
    %v2216 = vsub.s32 0, %v2215
    %v2217 = vrot.slane %v153, %v2216
    %2218 = vset.pattern.permute.xlu0 0
    %2219 = vperm.xlu0 %2218, %v2217
    %v2220 = vpop.permute.xlu0 %2219
    %v2222 = vadd.f32 %v2212, %v2220
    %v2223 = vxor.u32 %v2222, 2147483648
    %v2224 = vmul.f32 %v2223, 1.442695
    %v2225 = vpow.pop %v2224
    %v2226 = vadd.f32 %v2225, 1.0
    %v2227 = vrcp.pop %v2226
    %v2228 = vmul.f32 1.0, %v2227
    %vm2229 = vcmask 64512
    %2230 = vst.msk [vmem:[#allocation12] sm:$0xff] %vm2229, %v2228
    // Predicated region
    $region42: #{tpu_custom_call.1} parent=1 // pred_check
      _
    $region43: #{tpu_custom_call.1} parent=1 // pred_check_branch
      %2232 = sbr.rel (0) target = $region45
    $region44: #{tpu_custom_call.1} parent=1 // pred_region
      %s2234 = ssub.s32 128, 128
      %2235 = vsyncadd [#allocation8], %s2234
      %s2237 = sshll.u32 [#allocation12], 4
      %s2238 = int_to_ptr.vmem [resolvable:$true] %s2237
      %2240 = dma.vmem_to_hbm [thread:$0]  %s2238, 128, %s6, [#allocation8]
    $region45: #{tpu_custom_call.1} parent=1 // pred_fallthru
      _
    // Predicated region
    $region46: #{tpu_custom_call.1} parent=1 // pred_check
      _
    $region47: #{tpu_custom_call.1} parent=1 // pred_check_branch
      %2242 = sbr.rel (0) target = $region49
    $region48: #{tpu_custom_call.1} parent=1 // pred_region
      %2243 = dma.done [#allocation8], 128
    $region49: #{tpu_custom_call.1} parent=1 // pred_fallthru
      _
    %2244 = vsyncpa [#allocation7], 1
    %2245 = vsyncpa [#allocation10], 1
    %2246 = vsyncpa [#allocation8], 1

</llo_original>
